<compile_context>
chip_gen: v7x
topology: tpu7x:2x2x1
jax: 0.10.0
libtpu: 0.0.40
codegen_flags: <defaults>
</compile_context>

<pallas_src>
import functools

import jax
import jax.numpy as jnp
from jax import lax
from jax.experimental import pallas as pl
from jax.experimental.pallas import tpu as pltpu

BN_EPS = 1e-5


def _round_up(x, m):
    return (x + m - 1) // m * m


def _vmem():
    return pl.BlockSpec(memory_space=pltpu.MemorySpace.VMEM)


# ------------------------------ fused kernel -------------------------------- #

def _fused_encoder_kernel(x_ref, wblk_ref, wmisc_ref, const_ref, out_ref,
                          *, B, H, W, C, depth):
    NL = out_ref.shape[1]                 # lane-padded pixel count (multiple of 128)
    HW = H * W
    N = B * HW                            # valid pixels
    inv_n = 1.0 / float(N)
    K9 = 7 * 7                            # embed taps

    # Precomputed masks (shipped in the constants slab; no iota/cmp prologue).
    tap = const_ref[0:9, :]               # (9, NL)  3x3 tap validity masks
    seg = const_ref[9:9 + B, :]           # (B, NL)  per-batch valid-lane masks

    taps_off = [(ky - 1) * W + (kx - 1) for ky in range(3) for kx in range(3)]

    def patches_T(hT):
        """(9*C, NL) im2col of a 3x3 same-conv via masked lane rolls (XLU)."""
        pieces = []
        for t, off in enumerate(taps_off):
            sh = hT if off == 0 else pltpu.roll(hT, shift=(-off) % NL, axis=1)
            pieces.append(sh * tap[t:t + 1, :])
        return jnp.concatenate(pieces, axis=0)

    def conv_bn(hT, k):
        """3x3 conv + train-mode BatchNorm folded to one scale/shift.

        Conv bias is cancelled exactly by the batch-mean subtraction (and is 0
        at init), so it is never materialized.
        """
        p = wblk_ref[k]                                        # (C, 9C+2)
        w = p[:, :9 * C]
        gamma = p[:, 9 * C:9 * C + 1]
        beta = p[:, 9 * C + 1:9 * C + 2]
        y = jnp.dot(w, patches_T(hT),
                    preferred_element_type=jnp.float32)        # (C, NL)
        # Padding lanes of y are exactly zero (tap masks zero every patch column
        # there), so a single unmasked reduce gives both batch statistics.
        s = jnp.sum(jnp.concatenate([y, y * y], axis=0),
                    axis=1, keepdims=True)                     # (2C, 1)
        mean = s[:C] * inv_n
        var = jnp.maximum(s[C:] * inv_n - mean * mean, 0.0)
        scale = gamma * lax.rsqrt(var + BN_EPS)
        shift = beta - scale * mean
        return y * scale + shift

    # ---- embed: Conv2d(1, C, 7, stride=4, pad=3, bias=False) + ReLU ----
    we = wmisc_ref[0:C, 0:K9]                                  # (C, 49)
    hT = jnp.maximum(jnp.dot(we, x_ref[0:K9, :],
                             preferred_element_type=jnp.float32), 0.0)

    # ---- residual blocks, fully VMEM-resident ----
    def res_block(d, h):
        identity = h
        h = jnp.maximum(conv_bn(h, 2 * d), 0.0)
        return jnp.maximum(conv_bn(h, 2 * d + 1) + identity, 0.0)

    if depth <= 4:
        for d in range(depth):            # unrolled: static wblk indices
            hT = res_block(d, hT)
    else:
        hT = lax.fori_loop(0, depth, res_block, hT)   # bounded live ranges

    # ---- fused mu / logvar head: one (2, 9C) x (9C, NL) matmul ----
    wh = wmisc_ref[C:C + 2, 0:9 * C]                           # (2, 9C)
    bh = wmisc_ref[C:C + 2, 9 * C:9 * C + 1]                   # (2, 1)
    heads = jnp.dot(wh, patches_T(hT),
                    preferred_element_type=jnp.float32) + bh   # (2, NL)
    mu_row = heads[0:1]
    lv_row = heads[1:2]

    # ---- reparameterized sample + logq(z|x) ----
    eps_row = x_ref[K9:K9 + 1, :]                              # (1, NL)
    z_row = mu_row + jnp.exp(0.5 * lv_row) * eps_row
    # (z - mu)^2 / exp(logvar) == eps^2 exactly -> matches the reference formula.
    lq_elem = 0.5 * (lv_row + eps_row * eps_row)               # (1, NL)
    lq = jnp.sum(seg * lq_elem, axis=1, keepdims=True)         # (B, 1)
    lq_row = jnp.sum(seg * lq, axis=0, keepdims=True)          # (1, NL) bcast per segment

    # single lane-dense output slab: rows = z, mu, logvar, logq
    out_ref[...] = jnp.concatenate([z_row, mu_row, lv_row, lq_row], axis=0)


# ------------------------------ packing (once) ------------------------------ #

def pack_params(params, B, in_h, in_w):
    """Pack weights + static masks into a few lane-dense slabs.  Runs once,
    OUTSIDE the per-call jit path."""
    C = params["embed_w"].shape[0]
    depth = len(params["blocks"])
    H = (in_h + 2 * 3 - 7) // 4 + 1
    W = (in_w + 2 * 3 - 7) // 4 + 1
    HW = H * W
    N = B * HW
    NL = _round_up(N, 128)

    # per-conv slab: [conv weight | gamma | beta] per row-block
    rows = []
    for blk in params["blocks"]:
        for wi, gi, bi in ((blk["w1"], blk["g1"], blk["beta1"]),
                           (blk["w2"], blk["g2"], blk["beta2"])):
            w = jnp.transpose(wi, (0, 2, 3, 1)).reshape(C, 9 * C)  # cols = (tap, cin)
            rows.append(jnp.concatenate([w, gi[:, None], bi[:, None]], axis=1))
    wblk = jnp.stack(rows, axis=0).astype(jnp.float32)            # (2*depth, C, 9C+2)

    # misc slab: embed weight + fused head weight/bias
    Wm = max(7 * 7, 9 * C + 1)
    wmisc = jnp.zeros((C + 2, Wm), jnp.float32)
    wmisc = wmisc.at[0:C, 0:49].set(params["embed_w"].reshape(C, 49))
    whm = jnp.transpose(params["mu_w"], (0, 2, 3, 1)).reshape(1, 9 * C)
    whv = jnp.transpose(params["var_w"], (0, 2, 3, 1)).reshape(1, 9 * C)
    wmisc = wmisc.at[C:C + 2, 0:9 * C].set(jnp.concatenate([whm, whv], axis=0))
    wmisc = wmisc.at[C, 9 * C].set(params["mu_b"][0])
    wmisc = wmisc.at[C + 1, 9 * C].set(params["var_b"][0])

    # constants slab: 9 tap masks + B logq segment masks (shape-only)
    lane = jnp.arange(NL)
    valid = lane < N
    row = (lane % HW) // W
    col = lane % W
    masks = []
    for ky in range(3):
        for kx in range(3):
            sr = row + (ky - 1)
            sc = col + (kx - 1)
            masks.append(valid & (sr >= 0) & (sr < H) & (sc >= 0) & (sc < W))
    tap = jnp.stack(masks, axis=0).astype(jnp.float32)            # (9, NL)
    segm = (((lane // HW)[None, :] == jnp.arange(B)[:, None]) & valid[None, :]
            ).astype(jnp.float32)                                 # (B, NL)
    consts = jnp.concatenate([tap, segm], axis=0)                 # (9+B, NL)

    packed = {"wblk": wblk, "wmisc": wmisc, "consts": consts}
    meta = dict(B=B, H=H, W=W, C=C, depth=depth, N=N, NL=NL)
    return packed, meta


# ------------------------------ per-call wrapper ----------------------------- #

def vae_encoder_forward(packed, meta, x_nchw, epsilon_nchw):
    B, H, W, C = meta["B"], meta["H"], meta["W"], meta["C"]
    depth, N, NL = meta["depth"], meta["N"], meta["NL"]
    HW = H * W

    # one fused patch-extraction op for the 7x7 / stride-4 embed conv
    patches = lax.conv_general_dilated_patches(
        x_nchw.astype(jnp.float32), filter_shape=(7, 7), window_strides=(4, 4),
        padding=((3, 3), (3, 3)), dimension_numbers=("NCHW", "OIHW", "NCHW"),
        precision=lax.Precision.HIGHEST)                  # (B, 49, H, W)
    peT = jnp.transpose(patches, (1, 0, 2, 3)).reshape(49, N)     # pixels on lanes
    eps_row = epsilon_nchw.astype(jnp.float32).reshape(1, N)
    xslab = jnp.pad(jnp.concatenate([peT, eps_row], axis=0),
                    ((0, 0), (0, NL - N)))                        # (50, NL)

    kernel = functools.partial(_fused_encoder_kernel,
                               B=B, H=H, W=W, C=C, depth=depth)
    out = pl.pallas_call(
        kernel,
        out_shape=jax.ShapeDtypeStruct((4, NL), jnp.float32),
        in_specs=[_vmem(), _vmem(), _vmem(), _vmem()],
        out_specs=_vmem(),
    )(xslab, packed["wblk"], packed["wmisc"], packed["consts"])

    z = out[0, :N].reshape(B, HW)
    mu = out[1, :N].reshape(B, HW)
    logvar = out[2, :N].reshape(B, HW)
    logqzx = out[3, :N].reshape(B, HW)[:, 0]
    return z, logqzx, mu, logvar


# ------------------------------- parameters --------------------------------- #

def init_params(key, capacity, depth):
    """Matches module init: every *weight* ~ N(0, 0.01), every *bias* = 0."""
    C = capacity
    ks = jax.random.split(key, 3 + 4 * depth)
    nrm = lambda k, s: (0.01 * jax.random.normal(k, s)).astype(jnp.float32)
    i = 0
    params = {"embed_w": nrm(ks[i], (C, 1, 7, 7))}
    i += 1
    blocks = []
    for _ in range(depth):
        blocks.append({
            "w1": nrm(ks[i + 0], (C, C, 3, 3)),
            "b1": jnp.zeros((C,), jnp.float32),     # inert: cancelled by train-mode BN
            "g1": nrm(ks[i + 1], (C,)),             # BN weight (gamma)
            "beta1": jnp.zeros((C,), jnp.float32),  # BN bias (beta)
            "w2": nrm(ks[i + 2], (C, C, 3, 3)),
            "b2": jnp.zeros((C,), jnp.float32),     # inert: cancelled by train-mode BN
            "g2": nrm(ks[i + 3], (C,)),
            "beta2": jnp.zeros((C,), jnp.float32),
        })
        i += 4
    params["blocks"] = blocks
    params["mu_w"] = nrm(ks[i], (1, C, 3, 3)); i += 1
    params["mu_b"] = jnp.zeros((1,), jnp.float32)
    params["var_w"] = nrm(ks[i], (1, C, 3, 3)); i += 1
    params["var_b"] = jnp.zeros((1,), jnp.float32)
    return params


# ----------------------------------- main ------------------------------------ #

if __name__ == "__main__":
    capacity, depth, B = 8, 2, 2          # small shapes; 28x28 input -> 7x7 latent (=49)
    key = jax.random.PRNGKey(0)
    kp, kx, ke = jax.random.split(key, 3)

    params = init_params(kp, capacity, depth)
    x = jax.random.normal(kx, (B, 1, 28, 28), dtype=jnp.float32)        # NCHW input
    epsilon = jax.random.normal(ke, (B, 1, 7, 7), dtype=jnp.float32)    # NCHW noise

    # one-time packing (outside the per-call jit path)
    packed, meta = pack_params(params, B, 28, 28)

    fwd = jax.jit(lambda xx, ee: vae_encoder_forward(packed, meta, xx, ee))
    z, logqzx, mu, logvar = fwd(x, epsilon)
    jax.block_until_ready((z, logqzx, mu, logvar))

    assert z.shape == (B, 49)
    assert logqzx.shape == (B,)
    assert mu.shape == (B, 49)
    assert logvar.shape == (B, 49)
    assert all(bool(jnp.all(jnp.isfinite(t))) for t in (z, logqzx, mu, logvar))
    print("KERNEL_OK")
</pallas_src>

<mosaic_0001>
module attributes {stable_mosaic.version = 11 : i64} {
  func.func @_fused_encoder_kernel(%arg0: memref<50x128xf32, #tpu.memory_space<vmem>>, %arg1: memref<4x8x74xf32, #tpu.memory_space<vmem>>, %arg2: memref<10x73xf32, #tpu.memory_space<vmem>>, %arg3: memref<11x128xf32, #tpu.memory_space<vmem>>, %arg4: memref<4x128xf32, #tpu.memory_space<vmem>>) attributes {dimension_semantics = [], scalar_prefetch = 0 : i64, scratch_operands = 0 : i64, tpu.core_type = #tpu.core_type<tc>} {
    %c0 = arith.constant 0 : index
    %c0_0 = arith.constant 0 : index
    %0 = vector.load %arg3[%c0, %c0_0] : memref<11x128xf32, #tpu.memory_space<vmem>>, vector<9x128xf32>
    %c9 = arith.constant 9 : index
    %c0_1 = arith.constant 0 : index
    %1 = vector.load %arg3[%c9, %c0_1] : memref<11x128xf32, #tpu.memory_space<vmem>>, vector<2x128xf32>
    %c0_2 = arith.constant 0 : index
    %c0_3 = arith.constant 0 : index
    %2 = vector.load %arg2[%c0_2, %c0_3] : memref<10x73xf32, #tpu.memory_space<vmem>>, vector<8x49xf32>
    %c0_4 = arith.constant 0 : index
    %c0_5 = arith.constant 0 : index
    %3 = vector.load %arg0[%c0_4, %c0_5] : memref<50x128xf32, #tpu.memory_space<vmem>>, vector<49x128xf32>
    %cst = arith.constant dense<0.000000e+00> : vector<8x128xf32>
    %4 = tpu.matmul %2, %3, %cst {dimension_numbers = #tpu.dot_dimension_numbers<[1], [0], [0], [1], [0, 0, 1, 1], [], []>} : vector<8x49xf32>, vector<49x128xf32>, vector<8x128xf32> -> vector<8x128xf32>
    %cst_6 = arith.constant 0.000000e+00 : f32
    %5 = vector.broadcast %cst_6 : f32 to vector<8x128xf32>
    %6 = arith.maximumf %4, %5 : vector<8x128xf32>
    %c0_7 = arith.constant 0 : index
    %c0_8 = arith.constant 0 : index
    %c0_9 = arith.constant 0 : index
    %7 = vector.load %arg1[%c0_7, %c0_8, %c0_9] : memref<4x8x74xf32, #tpu.memory_space<vmem>>, vector<1x8x74xf32>
    %8 = vector.shape_cast %7 : vector<1x8x74xf32> to vector<8x74xf32>
    %9 = vector.extract_strided_slice %8 {offsets = [0, 0], sizes = [8, 72], strides = [1, 1]} : vector<8x74xf32> to vector<8x72xf32>
    %10 = vector.extract_strided_slice %8 {offsets = [0, 72], sizes = [8, 1], strides = [1, 1]} : vector<8x74xf32> to vector<8x1xf32>
    %11 = vector.extract_strided_slice %8 {offsets = [0, 73], sizes = [8, 1], strides = [1, 1]} : vector<8x74xf32> to vector<8x1xf32>
    %c8_i32 = arith.constant 8 : i32
    %12 = tpu.dynamic_rotate %6 by %c8_i32 dim 1 : vector<8x128xf32>, i32 -> vector<8x128xf32>
    %13 = vector.extract_strided_slice %0 {offsets = [0, 0], sizes = [1, 128], strides = [1, 1]} : vector<9x128xf32> to vector<1x128xf32>
    %14 = vector.broadcast %13 : vector<1x128xf32> to vector<8x128xf32>
    %15 = arith.mulf %12, %14 : vector<8x128xf32>
    %c7_i32 = arith.constant 7 : i32
    %16 = tpu.dynamic_rotate %6 by %c7_i32 dim 1 : vector<8x128xf32>, i32 -> vector<8x128xf32>
    %17 = vector.extract_strided_slice %0 {offsets = [1, 0], sizes = [1, 128], strides = [1, 1]} : vector<9x128xf32> to vector<1x128xf32>
    %18 = vector.broadcast %17 : vector<1x128xf32> to vector<8x128xf32>
    %19 = arith.mulf %16, %18 : vector<8x128xf32>
    %c6_i32 = arith.constant 6 : i32
    %20 = tpu.dynamic_rotate %6 by %c6_i32 dim 1 : vector<8x128xf32>, i32 -> vector<8x128xf32>
    %21 = vector.extract_strided_slice %0 {offsets = [2, 0], sizes = [1, 128], strides = [1, 1]} : vector<9x128xf32> to vector<1x128xf32>
    %22 = vector.broadcast %21 : vector<1x128xf32> to vector<8x128xf32>
    %23 = arith.mulf %20, %22 : vector<8x128xf32>
    %c1_i32 = arith.constant 1 : i32
    %24 = tpu.dynamic_rotate %6 by %c1_i32 dim 1 : vector<8x128xf32>, i32 -> vector<8x128xf32>
    %25 = vector.extract_strided_slice %0 {offsets = [3, 0], sizes = [1, 128], strides = [1, 1]} : vector<9x128xf32> to vector<1x128xf32>
    %26 = vector.broadcast %25 : vector<1x128xf32> to vector<8x128xf32>
    %27 = arith.mulf %24, %26 : vector<8x128xf32>
    %28 = vector.extract_strided_slice %0 {offsets = [4, 0], sizes = [1, 128], strides = [1, 1]} : vector<9x128xf32> to vector<1x128xf32>
    %29 = vector.broadcast %28 : vector<1x128xf32> to vector<8x128xf32>
    %30 = arith.mulf %6, %29 : vector<8x128xf32>
    %c127_i32 = arith.constant 127 : i32
    %31 = tpu.dynamic_rotate %6 by %c127_i32 dim 1 : vector<8x128xf32>, i32 -> vector<8x128xf32>
    %32 = vector.extract_strided_slice %0 {offsets = [5, 0], sizes = [1, 128], strides = [1, 1]} : vector<9x128xf32> to vector<1x128xf32>
    %33 = vector.broadcast %32 : vector<1x128xf32> to vector<8x128xf32>
    %34 = arith.mulf %31, %33 : vector<8x128xf32>
    %c122_i32 = arith.constant 122 : i32
    %35 = tpu.dynamic_rotate %6 by %c122_i32 dim 1 : vector<8x128xf32>, i32 -> vector<8x128xf32>
    %36 = vector.extract_strided_slice %0 {offsets = [6, 0], sizes = [1, 128], strides = [1, 1]} : vector<9x128xf32> to vector<1x128xf32>
    %37 = vector.broadcast %36 : vector<1x128xf32> to vector<8x128xf32>
    %38 = arith.mulf %35, %37 : vector<8x128xf32>
    %c121_i32 = arith.constant 121 : i32
    %39 = tpu.dynamic_rotate %6 by %c121_i32 dim 1 : vector<8x128xf32>, i32 -> vector<8x128xf32>
    %40 = vector.extract_strided_slice %0 {offsets = [7, 0], sizes = [1, 128], strides = [1, 1]} : vector<9x128xf32> to vector<1x128xf32>
    %41 = vector.broadcast %40 : vector<1x128xf32> to vector<8x128xf32>
    %42 = arith.mulf %39, %41 : vector<8x128xf32>
    %c120_i32 = arith.constant 120 : i32
    %43 = tpu.dynamic_rotate %6 by %c120_i32 dim 1 : vector<8x128xf32>, i32 -> vector<8x128xf32>
    %44 = vector.extract_strided_slice %0 {offsets = [8, 0], sizes = [1, 128], strides = [1, 1]} : vector<9x128xf32> to vector<1x128xf32>
    %45 = vector.broadcast %44 : vector<1x128xf32> to vector<8x128xf32>
    %46 = arith.mulf %43, %45 : vector<8x128xf32>
    %47 = tpu.concatenate %15, %19, %23, %27, %30, %34, %38, %42, %46 in 0 : vector<8x128xf32>, vector<8x128xf32>, vector<8x128xf32>, vector<8x128xf32>, vector<8x128xf32>, vector<8x128xf32>, vector<8x128xf32>, vector<8x128xf32>, vector<8x128xf32> -> vector<72x128xf32>
    %cst_10 = arith.constant dense<0.000000e+00> : vector<8x128xf32>
    %48 = tpu.matmul %9, %47, %cst_10 {dimension_numbers = #tpu.dot_dimension_numbers<[1], [0], [0], [1], [0, 0, 1, 1], [], []>} : vector<8x72xf32>, vector<72x128xf32>, vector<8x128xf32> -> vector<8x128xf32>
    %49 = arith.mulf %48, %48 : vector<8x128xf32>
    %50 = tpu.concatenate %48, %49 in 0 : vector<8x128xf32>, vector<8x128xf32> -> vector<16x128xf32>
    %cst_11 = arith.constant dense<0.000000e+00> : vector<16xf32>
    %51 = vector.multi_reduction <add>, %50, %cst_11 [1] : vector<16x128xf32> to vector<16xf32>
    %52 = vector.shape_cast %51 : vector<16xf32> to vector<16x1xf32>
    %53 = vector.extract_strided_slice %52 {offsets = [0, 0], sizes = [8, 1], strides = [1, 1]} : vector<16x1xf32> to vector<8x1xf32>
    %cst_12 = arith.constant 0.0102040814 : f32
    %54 = vector.broadcast %cst_12 : f32 to vector<8x1xf32>
    %55 = arith.mulf %53, %54 : vector<8x1xf32>
    %56 = vector.extract_strided_slice %52 {offsets = [8, 0], sizes = [8, 1], strides = [1, 1]} : vector<16x1xf32> to vector<8x1xf32>
    %cst_13 = arith.constant 0.0102040814 : f32
    %57 = vector.broadcast %cst_13 : f32 to vector<8x1xf32>
    %58 = arith.mulf %56, %57 : vector<8x1xf32>
    %59 = arith.mulf %55, %55 : vector<8x1xf32>
    %60 = arith.subf %58, %59 : vector<8x1xf32>
    %cst_14 = arith.constant 0.000000e+00 : f32
    %61 = vector.broadcast %cst_14 : f32 to vector<8x1xf32>
    %62 = arith.maximumf %60, %61 : vector<8x1xf32>
    %cst_15 = arith.constant 9.99999974E-6 : f32
    %63 = vector.broadcast %cst_15 : f32 to vector<8x1xf32>
    %64 = arith.addf %62, %63 : vector<8x1xf32>
    %65 = math.rsqrt %64 : vector<8x1xf32>
    %66 = arith.mulf %10, %65 : vector<8x1xf32>
    %67 = arith.mulf %66, %55 : vector<8x1xf32>
    %68 = arith.subf %11, %67 : vector<8x1xf32>
    %69 = vector.broadcast %66 : vector<8x1xf32> to vector<8x128xf32>
    %70 = arith.mulf %48, %69 : vector<8x128xf32>
    %71 = vector.broadcast %68 : vector<8x1xf32> to vector<8x128xf32>
    %72 = arith.addf %70, %71 : vector<8x128xf32>
    %cst_16 = arith.constant 0.000000e+00 : f32
    %73 = vector.broadcast %cst_16 : f32 to vector<8x128xf32>
    %74 = arith.maximumf %72, %73 : vector<8x128xf32>
    %c1 = arith.constant 1 : index
    %c0_17 = arith.constant 0 : index
    %c0_18 = arith.constant 0 : index
    %75 = vector.load %arg1[%c1, %c0_17, %c0_18] : memref<4x8x74xf32, #tpu.memory_space<vmem>>, vector<1x8x74xf32>
    %76 = vector.shape_cast %75 : vector<1x8x74xf32> to vector<8x74xf32>
    %77 = vector.extract_strided_slice %76 {offsets = [0, 0], sizes = [8, 72], strides = [1, 1]} : vector<8x74xf32> to vector<8x72xf32>
    %78 = vector.extract_strided_slice %76 {offsets = [0, 72], sizes = [8, 1], strides = [1, 1]} : vector<8x74xf32> to vector<8x1xf32>
    %79 = vector.extract_strided_slice %76 {offsets = [0, 73], sizes = [8, 1], strides = [1, 1]} : vector<8x74xf32> to vector<8x1xf32>
    %c8_i32_19 = arith.constant 8 : i32
    %80 = tpu.dynamic_rotate %74 by %c8_i32_19 dim 1 : vector<8x128xf32>, i32 -> vector<8x128xf32>
    %81 = vector.extract_strided_slice %0 {offsets = [0, 0], sizes = [1, 128], strides = [1, 1]} : vector<9x128xf32> to vector<1x128xf32>
    %82 = vector.broadcast %81 : vector<1x128xf32> to vector<8x128xf32>
    %83 = arith.mulf %80, %82 : vector<8x128xf32>
    %c7_i32_20 = arith.constant 7 : i32
    %84 = tpu.dynamic_rotate %74 by %c7_i32_20 dim 1 : vector<8x128xf32>, i32 -> vector<8x128xf32>
    %85 = vector.extract_strided_slice %0 {offsets = [1, 0], sizes = [1, 128], strides = [1, 1]} : vector<9x128xf32> to vector<1x128xf32>
    %86 = vector.broadcast %85 : vector<1x128xf32> to vector<8x128xf32>
    %87 = arith.mulf %84, %86 : vector<8x128xf32>
    %c6_i32_21 = arith.constant 6 : i32
    %88 = tpu.dynamic_rotate %74 by %c6_i32_21 dim 1 : vector<8x128xf32>, i32 -> vector<8x128xf32>
    %89 = vector.extract_strided_slice %0 {offsets = [2, 0], sizes = [1, 128], strides = [1, 1]} : vector<9x128xf32> to vector<1x128xf32>
    %90 = vector.broadcast %89 : vector<1x128xf32> to vector<8x128xf32>
    %91 = arith.mulf %88, %90 : vector<8x128xf32>
    %c1_i32_22 = arith.constant 1 : i32
    %92 = tpu.dynamic_rotate %74 by %c1_i32_22 dim 1 : vector<8x128xf32>, i32 -> vector<8x128xf32>
    %93 = vector.extract_strided_slice %0 {offsets = [3, 0], sizes = [1, 128], strides = [1, 1]} : vector<9x128xf32> to vector<1x128xf32>
    %94 = vector.broadcast %93 : vector<1x128xf32> to vector<8x128xf32>
    %95 = arith.mulf %92, %94 : vector<8x128xf32>
    %96 = vector.extract_strided_slice %0 {offsets = [4, 0], sizes = [1, 128], strides = [1, 1]} : vector<9x128xf32> to vector<1x128xf32>
    %97 = vector.broadcast %96 : vector<1x128xf32> to vector<8x128xf32>
    %98 = arith.mulf %74, %97 : vector<8x128xf32>
    %c127_i32_23 = arith.constant 127 : i32
    %99 = tpu.dynamic_rotate %74 by %c127_i32_23 dim 1 : vector<8x128xf32>, i32 -> vector<8x128xf32>
    %100 = vector.extract_strided_slice %0 {offsets = [5, 0], sizes = [1, 128], strides = [1, 1]} : vector<9x128xf32> to vector<1x128xf32>
    %101 = vector.broadcast %100 : vector<1x128xf32> to vector<8x128xf32>
    %102 = arith.mulf %99, %101 : vector<8x128xf32>
    %c122_i32_24 = arith.constant 122 : i32
    %103 = tpu.dynamic_rotate %74 by %c122_i32_24 dim 1 : vector<8x128xf32>, i32 -> vector<8x128xf32>
    %104 = vector.extract_strided_slice %0 {offsets = [6, 0], sizes = [1, 128], strides = [1, 1]} : vector<9x128xf32> to vector<1x128xf32>
    %105 = vector.broadcast %104 : vector<1x128xf32> to vector<8x128xf32>
    %106 = arith.mulf %103, %105 : vector<8x128xf32>
    %c121_i32_25 = arith.constant 121 : i32
    %107 = tpu.dynamic_rotate %74 by %c121_i32_25 dim 1 : vector<8x128xf32>, i32 -> vector<8x128xf32>
    %108 = vector.extract_strided_slice %0 {offsets = [7, 0], sizes = [1, 128], strides = [1, 1]} : vector<9x128xf32> to vector<1x128xf32>
    %109 = vector.broadcast %108 : vector<1x128xf32> to vector<8x128xf32>
    %110 = arith.mulf %107, %109 : vector<8x128xf32>
    %c120_i32_26 = arith.constant 120 : i32
    %111 = tpu.dynamic_rotate %74 by %c120_i32_26 dim 1 : vector<8x128xf32>, i32 -> vector<8x128xf32>
    %112 = vector.extract_strided_slice %0 {offsets = [8, 0], sizes = [1, 128], strides = [1, 1]} : vector<9x128xf32> to vector<1x128xf32>
    %113 = vector.broadcast %112 : vector<1x128xf32> to vector<8x128xf32>
    %114 = arith.mulf %111, %113 : vector<8x128xf32>
    %115 = tpu.concatenate %83, %87, %91, %95, %98, %102, %106, %110, %114 in 0 : vector<8x128xf32>, vector<8x128xf32>, vector<8x128xf32>, vector<8x128xf32>, vector<8x128xf32>, vector<8x128xf32>, vector<8x128xf32>, vector<8x128xf32>, vector<8x128xf32> -> vector<72x128xf32>
    %cst_27 = arith.constant dense<0.000000e+00> : vector<8x128xf32>
    %116 = tpu.matmul %77, %115, %cst_27 {dimension_numbers = #tpu.dot_dimension_numbers<[1], [0], [0], [1], [0, 0, 1, 1], [], []>} : vector<8x72xf32>, vector<72x128xf32>, vector<8x128xf32> -> vector<8x128xf32>
    %117 = arith.mulf %116, %116 : vector<8x128xf32>
    %118 = tpu.concatenate %116, %117 in 0 : vector<8x128xf32>, vector<8x128xf32> -> vector<16x128xf32>
    %cst_28 = arith.constant dense<0.000000e+00> : vector<16xf32>
    %119 = vector.multi_reduction <add>, %118, %cst_28 [1] : vector<16x128xf32> to vector<16xf32>
    %120 = vector.shape_cast %119 : vector<16xf32> to vector<16x1xf32>
    %121 = vector.extract_strided_slice %120 {offsets = [0, 0], sizes = [8, 1], strides = [1, 1]} : vector<16x1xf32> to vector<8x1xf32>
    %cst_29 = arith.constant 0.0102040814 : f32
    %122 = vector.broadcast %cst_29 : f32 to vector<8x1xf32>
    %123 = arith.mulf %121, %122 : vector<8x1xf32>
    %124 = vector.extract_strided_slice %120 {offsets = [8, 0], sizes = [8, 1], strides = [1, 1]} : vector<16x1xf32> to vector<8x1xf32>
    %cst_30 = arith.constant 0.0102040814 : f32
    %125 = vector.broadcast %cst_30 : f32 to vector<8x1xf32>
    %126 = arith.mulf %124, %125 : vector<8x1xf32>
    %127 = arith.mulf %123, %123 : vector<8x1xf32>
    %128 = arith.subf %126, %127 : vector<8x1xf32>
    %cst_31 = arith.constant 0.000000e+00 : f32
    %129 = vector.broadcast %cst_31 : f32 to vector<8x1xf32>
    %130 = arith.maximumf %128, %129 : vector<8x1xf32>
    %cst_32 = arith.constant 9.99999974E-6 : f32
    %131 = vector.broadcast %cst_32 : f32 to vector<8x1xf32>
    %132 = arith.addf %130, %131 : vector<8x1xf32>
    %133 = math.rsqrt %132 : vector<8x1xf32>
    %134 = arith.mulf %78, %133 : vector<8x1xf32>
    %135 = arith.mulf %134, %123 : vector<8x1xf32>
    %136 = arith.subf %79, %135 : vector<8x1xf32>
    %137 = vector.broadcast %134 : vector<8x1xf32> to vector<8x128xf32>
    %138 = arith.mulf %116, %137 : vector<8x128xf32>
    %139 = vector.broadcast %136 : vector<8x1xf32> to vector<8x128xf32>
    %140 = arith.addf %138, %139 : vector<8x128xf32>
    %141 = arith.addf %140, %6 : vector<8x128xf32>
    %cst_33 = arith.constant 0.000000e+00 : f32
    %142 = vector.broadcast %cst_33 : f32 to vector<8x128xf32>
    %143 = arith.maximumf %141, %142 : vector<8x128xf32>
    %c2 = arith.constant 2 : index
    %c0_34 = arith.constant 0 : index
    %c0_35 = arith.constant 0 : index
    %144 = vector.load %arg1[%c2, %c0_34, %c0_35] : memref<4x8x74xf32, #tpu.memory_space<vmem>>, vector<1x8x74xf32>
    %145 = vector.shape_cast %144 : vector<1x8x74xf32> to vector<8x74xf32>
    %146 = vector.extract_strided_slice %145 {offsets = [0, 0], sizes = [8, 72], strides = [1, 1]} : vector<8x74xf32> to vector<8x72xf32>
    %147 = vector.extract_strided_slice %145 {offsets = [0, 72], sizes = [8, 1], strides = [1, 1]} : vector<8x74xf32> to vector<8x1xf32>
    %148 = vector.extract_strided_slice %145 {offsets = [0, 73], sizes = [8, 1], strides = [1, 1]} : vector<8x74xf32> to vector<8x1xf32>
    %c8_i32_36 = arith.constant 8 : i32
    %149 = tpu.dynamic_rotate %143 by %c8_i32_36 dim 1 : vector<8x128xf32>, i32 -> vector<8x128xf32>
    %150 = vector.extract_strided_slice %0 {offsets = [0, 0], sizes = [1, 128], strides = [1, 1]} : vector<9x128xf32> to vector<1x128xf32>
    %151 = vector.broadcast %150 : vector<1x128xf32> to vector<8x128xf32>
    %152 = arith.mulf %149, %151 : vector<8x128xf32>
    %c7_i32_37 = arith.constant 7 : i32
    %153 = tpu.dynamic_rotate %143 by %c7_i32_37 dim 1 : vector<8x128xf32>, i32 -> vector<8x128xf32>
    %154 = vector.extract_strided_slice %0 {offsets = [1, 0], sizes = [1, 128], strides = [1, 1]} : vector<9x128xf32> to vector<1x128xf32>
    %155 = vector.broadcast %154 : vector<1x128xf32> to vector<8x128xf32>
    %156 = arith.mulf %153, %155 : vector<8x128xf32>
    %c6_i32_38 = arith.constant 6 : i32
    %157 = tpu.dynamic_rotate %143 by %c6_i32_38 dim 1 : vector<8x128xf32>, i32 -> vector<8x128xf32>
    %158 = vector.extract_strided_slice %0 {offsets = [2, 0], sizes = [1, 128], strides = [1, 1]} : vector<9x128xf32> to vector<1x128xf32>
    %159 = vector.broadcast %158 : vector<1x128xf32> to vector<8x128xf32>
    %160 = arith.mulf %157, %159 : vector<8x128xf32>
    %c1_i32_39 = arith.constant 1 : i32
    %161 = tpu.dynamic_rotate %143 by %c1_i32_39 dim 1 : vector<8x128xf32>, i32 -> vector<8x128xf32>
    %162 = vector.extract_strided_slice %0 {offsets = [3, 0], sizes = [1, 128], strides = [1, 1]} : vector<9x128xf32> to vector<1x128xf32>
    %163 = vector.broadcast %162 : vector<1x128xf32> to vector<8x128xf32>
    %164 = arith.mulf %161, %163 : vector<8x128xf32>
    %165 = vector.extract_strided_slice %0 {offsets = [4, 0], sizes = [1, 128], strides = [1, 1]} : vector<9x128xf32> to vector<1x128xf32>
    %166 = vector.broadcast %165 : vector<1x128xf32> to vector<8x128xf32>
    %167 = arith.mulf %143, %166 : vector<8x128xf32>
    %c127_i32_40 = arith.constant 127 : i32
    %168 = tpu.dynamic_rotate %143 by %c127_i32_40 dim 1 : vector<8x128xf32>, i32 -> vector<8x128xf32>
    %169 = vector.extract_strided_slice %0 {offsets = [5, 0], sizes = [1, 128], strides = [1, 1]} : vector<9x128xf32> to vector<1x128xf32>
    %170 = vector.broadcast %169 : vector<1x128xf32> to vector<8x128xf32>
    %171 = arith.mulf %168, %170 : vector<8x128xf32>
    %c122_i32_41 = arith.constant 122 : i32
    %172 = tpu.dynamic_rotate %143 by %c122_i32_41 dim 1 : vector<8x128xf32>, i32 -> vector<8x128xf32>
    %173 = vector.extract_strided_slice %0 {offsets = [6, 0], sizes = [1, 128], strides = [1, 1]} : vector<9x128xf32> to vector<1x128xf32>
    %174 = vector.broadcast %173 : vector<1x128xf32> to vector<8x128xf32>
    %175 = arith.mulf %172, %174 : vector<8x128xf32>
    %c121_i32_42 = arith.constant 121 : i32
    %176 = tpu.dynamic_rotate %143 by %c121_i32_42 dim 1 : vector<8x128xf32>, i32 -> vector<8x128xf32>
    %177 = vector.extract_strided_slice %0 {offsets = [7, 0], sizes = [1, 128], strides = [1, 1]} : vector<9x128xf32> to vector<1x128xf32>
    %178 = vector.broadcast %177 : vector<1x128xf32> to vector<8x128xf32>
    %179 = arith.mulf %176, %178 : vector<8x128xf32>
    %c120_i32_43 = arith.constant 120 : i32
    %180 = tpu.dynamic_rotate %143 by %c120_i32_43 dim 1 : vector<8x128xf32>, i32 -> vector<8x128xf32>
    %181 = vector.extract_strided_slice %0 {offsets = [8, 0], sizes = [1, 128], strides = [1, 1]} : vector<9x128xf32> to vector<1x128xf32>
    %182 = vector.broadcast %181 : vector<1x128xf32> to vector<8x128xf32>
    %183 = arith.mulf %180, %182 : vector<8x128xf32>
    %184 = tpu.concatenate %152, %156, %160, %164, %167, %171, %175, %179, %183 in 0 : vector<8x128xf32>, vector<8x128xf32>, vector<8x128xf32>, vector<8x128xf32>, vector<8x128xf32>, vector<8x128xf32>, vector<8x128xf32>, vector<8x128xf32>, vector<8x128xf32> -> vector<72x128xf32>
    %cst_44 = arith.constant dense<0.000000e+00> : vector<8x128xf32>
    %185 = tpu.matmul %146, %184, %cst_44 {dimension_numbers = #tpu.dot_dimension_numbers<[1], [0], [0], [1], [0, 0, 1, 1], [], []>} : vector<8x72xf32>, vector<72x128xf32>, vector<8x128xf32> -> vector<8x128xf32>
    %186 = arith.mulf %185, %185 : vector<8x128xf32>
    %187 = tpu.concatenate %185, %186 in 0 : vector<8x128xf32>, vector<8x128xf32> -> vector<16x128xf32>
    %cst_45 = arith.constant dense<0.000000e+00> : vector<16xf32>
    %188 = vector.multi_reduction <add>, %187, %cst_45 [1] : vector<16x128xf32> to vector<16xf32>
    %189 = vector.shape_cast %188 : vector<16xf32> to vector<16x1xf32>
    %190 = vector.extract_strided_slice %189 {offsets = [0, 0], sizes = [8, 1], strides = [1, 1]} : vector<16x1xf32> to vector<8x1xf32>
    %cst_46 = arith.constant 0.0102040814 : f32
    %191 = vector.broadcast %cst_46 : f32 to vector<8x1xf32>
    %192 = arith.mulf %190, %191 : vector<8x1xf32>
    %193 = vector.extract_strided_slice %189 {offsets = [8, 0], sizes = [8, 1], strides = [1, 1]} : vector<16x1xf32> to vector<8x1xf32>
    %cst_47 = arith.constant 0.0102040814 : f32
    %194 = vector.broadcast %cst_47 : f32 to vector<8x1xf32>
    %195 = arith.mulf %193, %194 : vector<8x1xf32>
    %196 = arith.mulf %192, %192 : vector<8x1xf32>
    %197 = arith.subf %195, %196 : vector<8x1xf32>
    %cst_48 = arith.constant 0.000000e+00 : f32
    %198 = vector.broadcast %cst_48 : f32 to vector<8x1xf32>
    %199 = arith.maximumf %197, %198 : vector<8x1xf32>
    %cst_49 = arith.constant 9.99999974E-6 : f32
    %200 = vector.broadcast %cst_49 : f32 to vector<8x1xf32>
    %201 = arith.addf %199, %200 : vector<8x1xf32>
    %202 = math.rsqrt %201 : vector<8x1xf32>
    %203 = arith.mulf %147, %202 : vector<8x1xf32>
    %204 = arith.mulf %203, %192 : vector<8x1xf32>
    %205 = arith.subf %148, %204 : vector<8x1xf32>
    %206 = vector.broadcast %203 : vector<8x1xf32> to vector<8x128xf32>
    %207 = arith.mulf %185, %206 : vector<8x128xf32>
    %208 = vector.broadcast %205 : vector<8x1xf32> to vector<8x128xf32>
    %209 = arith.addf %207, %208 : vector<8x128xf32>
    %cst_50 = arith.constant 0.000000e+00 : f32
    %210 = vector.broadcast %cst_50 : f32 to vector<8x128xf32>
    %211 = arith.maximumf %209, %210 : vector<8x128xf32>
    %c3 = arith.constant 3 : index
    %c0_51 = arith.constant 0 : index
    %c0_52 = arith.constant 0 : index
    %212 = vector.load %arg1[%c3, %c0_51, %c0_52] : memref<4x8x74xf32, #tpu.memory_space<vmem>>, vector<1x8x74xf32>
    %213 = vector.shape_cast %212 : vector<1x8x74xf32> to vector<8x74xf32>
    %214 = vector.extract_strided_slice %213 {offsets = [0, 0], sizes = [8, 72], strides = [1, 1]} : vector<8x74xf32> to vector<8x72xf32>
    %215 = vector.extract_strided_slice %213 {offsets = [0, 72], sizes = [8, 1], strides = [1, 1]} : vector<8x74xf32> to vector<8x1xf32>
    %216 = vector.extract_strided_slice %213 {offsets = [0, 73], sizes = [8, 1], strides = [1, 1]} : vector<8x74xf32> to vector<8x1xf32>
    %c8_i32_53 = arith.constant 8 : i32
    %217 = tpu.dynamic_rotate %211 by %c8_i32_53 dim 1 : vector<8x128xf32>, i32 -> vector<8x128xf32>
    %218 = vector.extract_strided_slice %0 {offsets = [0, 0], sizes = [1, 128], strides = [1, 1]} : vector<9x128xf32> to vector<1x128xf32>
    %219 = vector.broadcast %218 : vector<1x128xf32> to vector<8x128xf32>
    %220 = arith.mulf %217, %219 : vector<8x128xf32>
    %c7_i32_54 = arith.constant 7 : i32
    %221 = tpu.dynamic_rotate %211 by %c7_i32_54 dim 1 : vector<8x128xf32>, i32 -> vector<8x128xf32>
    %222 = vector.extract_strided_slice %0 {offsets = [1, 0], sizes = [1, 128], strides = [1, 1]} : vector<9x128xf32> to vector<1x128xf32>
    %223 = vector.broadcast %222 : vector<1x128xf32> to vector<8x128xf32>
    %224 = arith.mulf %221, %223 : vector<8x128xf32>
    %c6_i32_55 = arith.constant 6 : i32
    %225 = tpu.dynamic_rotate %211 by %c6_i32_55 dim 1 : vector<8x128xf32>, i32 -> vector<8x128xf32>
    %226 = vector.extract_strided_slice %0 {offsets = [2, 0], sizes = [1, 128], strides = [1, 1]} : vector<9x128xf32> to vector<1x128xf32>
    %227 = vector.broadcast %226 : vector<1x128xf32> to vector<8x128xf32>
    %228 = arith.mulf %225, %227 : vector<8x128xf32>
    %c1_i32_56 = arith.constant 1 : i32
    %229 = tpu.dynamic_rotate %211 by %c1_i32_56 dim 1 : vector<8x128xf32>, i32 -> vector<8x128xf32>
    %230 = vector.extract_strided_slice %0 {offsets = [3, 0], sizes = [1, 128], strides = [1, 1]} : vector<9x128xf32> to vector<1x128xf32>
    %231 = vector.broadcast %230 : vector<1x128xf32> to vector<8x128xf32>
    %232 = arith.mulf %229, %231 : vector<8x128xf32>
    %233 = vector.extract_strided_slice %0 {offsets = [4, 0], sizes = [1, 128], strides = [1, 1]} : vector<9x128xf32> to vector<1x128xf32>
    %234 = vector.broadcast %233 : vector<1x128xf32> to vector<8x128xf32>
    %235 = arith.mulf %211, %234 : vector<8x128xf32>
    %c127_i32_57 = arith.constant 127 : i32
    %236 = tpu.dynamic_rotate %211 by %c127_i32_57 dim 1 : vector<8x128xf32>, i32 -> vector<8x128xf32>
    %237 = vector.extract_strided_slice %0 {offsets = [5, 0], sizes = [1, 128], strides = [1, 1]} : vector<9x128xf32> to vector<1x128xf32>
    %238 = vector.broadcast %237 : vector<1x128xf32> to vector<8x128xf32>
    %239 = arith.mulf %236, %238 : vector<8x128xf32>
    %c122_i32_58 = arith.constant 122 : i32
    %240 = tpu.dynamic_rotate %211 by %c122_i32_58 dim 1 : vector<8x128xf32>, i32 -> vector<8x128xf32>
    %241 = vector.extract_strided_slice %0 {offsets = [6, 0], sizes = [1, 128], strides = [1, 1]} : vector<9x128xf32> to vector<1x128xf32>
    %242 = vector.broadcast %241 : vector<1x128xf32> to vector<8x128xf32>
    %243 = arith.mulf %240, %242 : vector<8x128xf32>
    %c121_i32_59 = arith.constant 121 : i32
    %244 = tpu.dynamic_rotate %211 by %c121_i32_59 dim 1 : vector<8x128xf32>, i32 -> vector<8x128xf32>
    %245 = vector.extract_strided_slice %0 {offsets = [7, 0], sizes = [1, 128], strides = [1, 1]} : vector<9x128xf32> to vector<1x128xf32>
    %246 = vector.broadcast %245 : vector<1x128xf32> to vector<8x128xf32>
    %247 = arith.mulf %244, %246 : vector<8x128xf32>
    %c120_i32_60 = arith.constant 120 : i32
    %248 = tpu.dynamic_rotate %211 by %c120_i32_60 dim 1 : vector<8x128xf32>, i32 -> vector<8x128xf32>
    %249 = vector.extract_strided_slice %0 {offsets = [8, 0], sizes = [1, 128], strides = [1, 1]} : vector<9x128xf32> to vector<1x128xf32>
    %250 = vector.broadcast %249 : vector<1x128xf32> to vector<8x128xf32>
    %251 = arith.mulf %248, %250 : vector<8x128xf32>
    %252 = tpu.concatenate %220, %224, %228, %232, %235, %239, %243, %247, %251 in 0 : vector<8x128xf32>, vector<8x128xf32>, vector<8x128xf32>, vector<8x128xf32>, vector<8x128xf32>, vector<8x128xf32>, vector<8x128xf32>, vector<8x128xf32>, vector<8x128xf32> -> vector<72x128xf32>
    %cst_61 = arith.constant dense<0.000000e+00> : vector<8x128xf32>
    %253 = tpu.matmul %214, %252, %cst_61 {dimension_numbers = #tpu.dot_dimension_numbers<[1], [0], [0], [1], [0, 0, 1, 1], [], []>} : vector<8x72xf32>, vector<72x128xf32>, vector<8x128xf32> -> vector<8x128xf32>
    %254 = arith.mulf %253, %253 : vector<8x128xf32>
    %255 = tpu.concatenate %253, %254 in 0 : vector<8x128xf32>, vector<8x128xf32> -> vector<16x128xf32>
    %cst_62 = arith.constant dense<0.000000e+00> : vector<16xf32>
    %256 = vector.multi_reduction <add>, %255, %cst_62 [1] : vector<16x128xf32> to vector<16xf32>
    %257 = vector.shape_cast %256 : vector<16xf32> to vector<16x1xf32>
    %258 = vector.extract_strided_slice %257 {offsets = [0, 0], sizes = [8, 1], strides = [1, 1]} : vector<16x1xf32> to vector<8x1xf32>
    %cst_63 = arith.constant 0.0102040814 : f32
    %259 = vector.broadcast %cst_63 : f32 to vector<8x1xf32>
    %260 = arith.mulf %258, %259 : vector<8x1xf32>
    %261 = vector.extract_strided_slice %257 {offsets = [8, 0], sizes = [8, 1], strides = [1, 1]} : vector<16x1xf32> to vector<8x1xf32>
    %cst_64 = arith.constant 0.0102040814 : f32
    %262 = vector.broadcast %cst_64 : f32 to vector<8x1xf32>
    %263 = arith.mulf %261, %262 : vector<8x1xf32>
    %264 = arith.mulf %260, %260 : vector<8x1xf32>
    %265 = arith.subf %263, %264 : vector<8x1xf32>
    %cst_65 = arith.constant 0.000000e+00 : f32
    %266 = vector.broadcast %cst_65 : f32 to vector<8x1xf32>
    %267 = arith.maximumf %265, %266 : vector<8x1xf32>
    %cst_66 = arith.constant 9.99999974E-6 : f32
    %268 = vector.broadcast %cst_66 : f32 to vector<8x1xf32>
    %269 = arith.addf %267, %268 : vector<8x1xf32>
    %270 = math.rsqrt %269 : vector<8x1xf32>
    %271 = arith.mulf %215, %270 : vector<8x1xf32>
    %272 = arith.mulf %271, %260 : vector<8x1xf32>
    %273 = arith.subf %216, %272 : vector<8x1xf32>
    %274 = vector.broadcast %271 : vector<8x1xf32> to vector<8x128xf32>
    %275 = arith.mulf %253, %274 : vector<8x128xf32>
    %276 = vector.broadcast %273 : vector<8x1xf32> to vector<8x128xf32>
    %277 = arith.addf %275, %276 : vector<8x128xf32>
    %278 = arith.addf %277, %143 : vector<8x128xf32>
    %cst_67 = arith.constant 0.000000e+00 : f32
    %279 = vector.broadcast %cst_67 : f32 to vector<8x128xf32>
    %280 = arith.maximumf %278, %279 : vector<8x128xf32>
    %c8 = arith.constant 8 : index
    %c0_68 = arith.constant 0 : index
    %281 = vector.load %arg2[%c8, %c0_68] : memref<10x73xf32, #tpu.memory_space<vmem>>, vector<2x72xf32>
    %c8_69 = arith.constant 8 : index
    %c72 = arith.constant 72 : index
    %282 = vector.load %arg2[%c8_69, %c72] : memref<10x73xf32, #tpu.memory_space<vmem>>, vector<2x1xf32>
    %c8_i32_70 = arith.constant 8 : i32
    %283 = tpu.dynamic_rotate %280 by %c8_i32_70 dim 1 : vector<8x128xf32>, i32 -> vector<8x128xf32>
    %284 = vector.extract_strided_slice %0 {offsets = [0, 0], sizes = [1, 128], strides = [1, 1]} : vector<9x128xf32> to vector<1x128xf32>
    %285 = vector.broadcast %284 : vector<1x128xf32> to vector<8x128xf32>
    %286 = arith.mulf %283, %285 : vector<8x128xf32>
    %c7_i32_71 = arith.constant 7 : i32
    %287 = tpu.dynamic_rotate %280 by %c7_i32_71 dim 1 : vector<8x128xf32>, i32 -> vector<8x128xf32>
    %288 = vector.extract_strided_slice %0 {offsets = [1, 0], sizes = [1, 128], strides = [1, 1]} : vector<9x128xf32> to vector<1x128xf32>
    %289 = vector.broadcast %288 : vector<1x128xf32> to vector<8x128xf32>
    %290 = arith.mulf %287, %289 : vector<8x128xf32>
    %c6_i32_72 = arith.constant 6 : i32
    %291 = tpu.dynamic_rotate %280 by %c6_i32_72 dim 1 : vector<8x128xf32>, i32 -> vector<8x128xf32>
    %292 = vector.extract_strided_slice %0 {offsets = [2, 0], sizes = [1, 128], strides = [1, 1]} : vector<9x128xf32> to vector<1x128xf32>
    %293 = vector.broadcast %292 : vector<1x128xf32> to vector<8x128xf32>
    %294 = arith.mulf %291, %293 : vector<8x128xf32>
    %c1_i32_73 = arith.constant 1 : i32
    %295 = tpu.dynamic_rotate %280 by %c1_i32_73 dim 1 : vector<8x128xf32>, i32 -> vector<8x128xf32>
    %296 = vector.extract_strided_slice %0 {offsets = [3, 0], sizes = [1, 128], strides = [1, 1]} : vector<9x128xf32> to vector<1x128xf32>
    %297 = vector.broadcast %296 : vector<1x128xf32> to vector<8x128xf32>
    %298 = arith.mulf %295, %297 : vector<8x128xf32>
    %299 = vector.extract_strided_slice %0 {offsets = [4, 0], sizes = [1, 128], strides = [1, 1]} : vector<9x128xf32> to vector<1x128xf32>
    %300 = vector.broadcast %299 : vector<1x128xf32> to vector<8x128xf32>
    %301 = arith.mulf %280, %300 : vector<8x128xf32>
    %c127_i32_74 = arith.constant 127 : i32
    %302 = tpu.dynamic_rotate %280 by %c127_i32_74 dim 1 : vector<8x128xf32>, i32 -> vector<8x128xf32>
    %303 = vector.extract_strided_slice %0 {offsets = [5, 0], sizes = [1, 128], strides = [1, 1]} : vector<9x128xf32> to vector<1x128xf32>
    %304 = vector.broadcast %303 : vector<1x128xf32> to vector<8x128xf32>
    %305 = arith.mulf %302, %304 : vector<8x128xf32>
    %c122_i32_75 = arith.constant 122 : i32
    %306 = tpu.dynamic_rotate %280 by %c122_i32_75 dim 1 : vector<8x128xf32>, i32 -> vector<8x128xf32>
    %307 = vector.extract_strided_slice %0 {offsets = [6, 0], sizes = [1, 128], strides = [1, 1]} : vector<9x128xf32> to vector<1x128xf32>
    %308 = vector.broadcast %307 : vector<1x128xf32> to vector<8x128xf32>
    %309 = arith.mulf %306, %308 : vector<8x128xf32>
    %c121_i32_76 = arith.constant 121 : i32
    %310 = tpu.dynamic_rotate %280 by %c121_i32_76 dim 1 : vector<8x128xf32>, i32 -> vector<8x128xf32>
    %311 = vector.extract_strided_slice %0 {offsets = [7, 0], sizes = [1, 128], strides = [1, 1]} : vector<9x128xf32> to vector<1x128xf32>
    %312 = vector.broadcast %311 : vector<1x128xf32> to vector<8x128xf32>
    %313 = arith.mulf %310, %312 : vector<8x128xf32>
    %c120_i32_77 = arith.constant 120 : i32
    %314 = tpu.dynamic_rotate %280 by %c120_i32_77 dim 1 : vector<8x128xf32>, i32 -> vector<8x128xf32>
    %315 = vector.extract_strided_slice %0 {offsets = [8, 0], sizes = [1, 128], strides = [1, 1]} : vector<9x128xf32> to vector<1x128xf32>
    %316 = vector.broadcast %315 : vector<1x128xf32> to vector<8x128xf32>
    %317 = arith.mulf %314, %316 : vector<8x128xf32>
    %318 = tpu.concatenate %286, %290, %294, %298, %301, %305, %309, %313, %317 in 0 : vector<8x128xf32>, vector<8x128xf32>, vector<8x128xf32>, vector<8x128xf32>, vector<8x128xf32>, vector<8x128xf32>, vector<8x128xf32>, vector<8x128xf32>, vector<8x128xf32> -> vector<72x128xf32>
    %cst_78 = arith.constant dense<0.000000e+00> : vector<2x128xf32>
    %319 = tpu.matmul %281, %318, %cst_78 {dimension_numbers = #tpu.dot_dimension_numbers<[1], [0], [0], [1], [0, 0, 1, 1], [], []>} : vector<2x72xf32>, vector<72x128xf32>, vector<2x128xf32> -> vector<2x128xf32>
    %320 = vector.broadcast %282 : vector<2x1xf32> to vector<2x128xf32>
    %321 = arith.addf %319, %320 : vector<2x128xf32>
    %322 = vector.extract_strided_slice %321 {offsets = [0, 0], sizes = [1, 128], strides = [1, 1]} : vector<2x128xf32> to vector<1x128xf32>
    %323 = vector.extract_strided_slice %321 {offsets = [1, 0], sizes = [1, 128], strides = [1, 1]} : vector<2x128xf32> to vector<1x128xf32>
    %c49 = arith.constant 49 : index
    %c0_79 = arith.constant 0 : index
    %324 = vector.load %arg0[%c49, %c0_79] : memref<50x128xf32, #tpu.memory_space<vmem>>, vector<1x128xf32>
    %cst_80 = arith.constant 5.000000e-01 : f32
    %325 = vector.broadcast %cst_80 : f32 to vector<1x128xf32>
    %326 = arith.mulf %325, %323 : vector<1x128xf32>
    %327 = math.exp %326 : vector<1x128xf32>
    %328 = arith.mulf %327, %324 : vector<1x128xf32>
    %329 = arith.addf %322, %328 : vector<1x128xf32>
    %330 = arith.mulf %324, %324 : vector<1x128xf32>
    %331 = arith.addf %323, %330 : vector<1x128xf32>
    %cst_81 = arith.constant 5.000000e-01 : f32
    %332 = vector.broadcast %cst_81 : f32 to vector<1x128xf32>
    %333 = arith.mulf %332, %331 : vector<1x128xf32>
    %334 = vector.broadcast %333 : vector<1x128xf32> to vector<2x128xf32>
    %335 = arith.mulf %1, %334 : vector<2x128xf32>
    %cst_82 = arith.constant dense<0.000000e+00> : vector<2xf32>
    %336 = vector.multi_reduction <add>, %335, %cst_82 [1] : vector<2x128xf32> to vector<2xf32>
    %337 = vector.shape_cast %336 : vector<2xf32> to vector<2x1xf32>
    %338 = vector.broadcast %337 : vector<2x1xf32> to vector<2x128xf32>
    %339 = arith.mulf %1, %338 : vector<2x128xf32>
    %cst_83 = arith.constant dense<0.000000e+00> : vector<128xf32>
    %340 = vector.multi_reduction <add>, %339, %cst_83 [0] : vector<2x128xf32> to vector<128xf32>
    %341 = vector.shape_cast %340 : vector<128xf32> to vector<1x128xf32>
    %342 = tpu.concatenate %329, %322, %323, %341 in 0 : vector<1x128xf32>, vector<1x128xf32>, vector<1x128xf32>, vector<1x128xf32> -> vector<4x128xf32>
    %c0_84 = arith.constant 0 : index
    %c0_85 = arith.constant 0 : index
    %343 = vector.load %arg4[%c0_84, %c0_85] : memref<4x128xf32, #tpu.memory_space<vmem>>, vector<4x128xf32>
    tpu.vector_store %arg4[%c0_84, %c0_85], %342 {strides = array<i32>} : memref<4x128xf32, #tpu.memory_space<vmem>>, vector<4x128xf32>,
    return
  }
}

</mosaic_0001>

<llo_original>
// kernel: squeeze.8
$region0: #{squeeze.8}
  %s0 = inlined_call_operand.vmem [shape: f32[98], index: 0, kind: input, shape index: {}]
  %s1 = inlined_call_operand.vmem [shape: f32[2,49], index: 1, kind: output, shape index: {}]
  $region1: #{squeeze.8} parent=0
    #allocation0 [shape = 'u8[4096]{0}', space=vmem, size = 0x1000, scoped, tag = 'scoped mem for output reshape']
    #allocation1 [shape = 'u8[4096]{0}', space=vmem, size = 0x1000, scoped, tag = 'scoped mem for input reshape']
    %s3 = sshllo.u32 0, 1
    %v4 = vld [vmem:[%s0] sm:%s3]
    %5 = vst [vmem:[#allocation1] sm:%s3] %v4
    %v6 = vld [vmem:[#allocation1] sm:$0x1]
    %vm7 = vcmask 400384
    %8 = vst.msk [vmem:[#allocation0] sm:$0x1] %vm7, %v6
    %v9 = vld [vmem:[#allocation1] sm:$0x1]
    %10 = vrot.lane.b32.xlu0 %v9, 79
    %v11 = vpop.permute.xlu0 %10
    %vm12 = vcmask 400384
    %s13 = scalar_lea.vmem [#allocation0], 1
    %14 = vst.msk [vmem:[%s13] sm:$0x1] %vm12, %v11
    %s16 = sshllo.u32 0, 2
    %v18 = vld [vmem:[#allocation0] sm:%s16]
    %s19 = sshllo.u32 0, 2
    %20 = vst [vmem:[%s1] sm:%s19] %v18

// kernel: squeeze.5
$region0: #{squeeze.5}
  %s0 = inlined_call_operand.vmem [shape: f32[98], index: 0, kind: input, shape index: {}]
  %s1 = inlined_call_operand.hbm [shape: f32[2,49], index: 1, kind: output, shape index: {}]
  $region1: #{squeeze.5} parent=0
    #allocation0 [shape = 'u8[1024]{0}', space=vmem, size = 0x400, scoped, tag = 'operand span for operand 1']
    #allocation1 [shape = 's32[1]{0}', space=sflag, size = 0x4, scoped, tag = 'scoped memory for squeeze.5']
    #allocation2 [shape = 'u8[4096]{0}', space=vmem, size = 0x1000, scoped, tag = 'scoped mem for output reshape']
    #allocation3 [shape = 'u8[4096]{0}', space=vmem, size = 0x1000, scoped, tag = 'scoped mem for input reshape']
    %2 = vsyncpa [#allocation1], 0
    %s4 = sshllo.u32 0, 1
    %v5 = vld [vmem:[%s0] sm:%s4]
    %6 = vst [vmem:[#allocation3] sm:%s4] %v5
    %v7 = vld [vmem:[#allocation3] sm:$0x1]
    %vm8 = vcmask 400384
    %9 = vst.msk [vmem:[#allocation2] sm:$0x1] %vm8, %v7
    %v10 = vld [vmem:[#allocation3] sm:$0x1]
    %11 = vrot.lane.b32.xlu0 %v10, 79
    %v12 = vpop.permute.xlu0 %11
    %vm13 = vcmask 400384
    %s14 = scalar_lea.vmem [#allocation2], 1
    %15 = vst.msk [vmem:[%s14] sm:$0x1] %vm13, %v12
    %s17 = sshllo.u32 0, 2
    %v19 = vld [vmem:[#allocation2] sm:%s17]
    %s20 = sshllo.u32 0, 2
    %21 = vst [vmem:[#allocation0] sm:%s20] %v19
    %s23 = ssub.s32 32, 32
    %24 = vsyncadd [#allocation1], %s23
    %s26 = sshll.u32 [#allocation0], 4
    %s27 = int_to_ptr.vmem [resolvable:$true] %s26
    %29 = dma.vmem_to_hbm [thread:$0]  %s27, 32, %s1, [#allocation1]
    %30 = dma.done [#allocation1], 32
    %31 = vsyncpa [#allocation1], 1

// kernel: _lambda_.1
$region0: #{_lambda_.1}
  #allocation0 [shape = 'u32[]', space=smem, size = 0x4, offset = 0x4, fixed_abs, tag = 'smem constant byte address 0x4 - core index']
  #allocation1 [shape = 'u32[144,128]{1,0:T(1,128)}', space=vmem, size = 0x12000, scoped, tag = 'internal scratch']
  %s0 = inlined_call_operand.vmem [shape: f32[50,128], index: 0, kind: input, shape index: {}]
  %s1 = inlined_call_operand.vmem [shape: f32[4,8,74], index: 1, kind: input, shape index: {}]
  %s2 = inlined_call_operand.vmem [shape: f32[10,73], index: 2, kind: input, shape index: {}]
  %s3 = inlined_call_operand.vmem [shape: f32[11,128], index: 3, kind: input, shape index: {}]
  %s4 = inlined_call_operand.vmem [shape: f32[4,128], index: 4, kind: output, shape index: {}]
  %s5 = sld [smem:[#allocation0]]
  $region26: #{_lambda_.1} parent=0
    _
  %s7 = ssub.s32 1, %s5
  %s8 = scalar_select 0, %s7, %s5
  // Predicated region
  $region2: #{_lambda_.1} parent=0 // pred_check
    _
  $region3: #{_lambda_.1} parent=0 // pred_check_branch
    %10 = sbr.rel (0) target = $region5
  $region4: #{_lambda_.1} parent=0 // pred_region
    _
  $region5: #{_lambda_.1} parent=0 // pred_fallthru
    _
  // Predicated region
  $region6: #{_lambda_.1} parent=0 // pred_check
    _
  $region7: #{_lambda_.1} parent=0 // pred_check_branch
    %12 = sbr.rel (0) target = $region9
  $region8: #{_lambda_.1} parent=0 // pred_region
    _
  $region9: #{_lambda_.1} parent=0 // pred_fallthru
    _
  // Predicated region
  $region10: #{_lambda_.1} parent=0 // pred_check
    _
  $region11: #{_lambda_.1} parent=0 // pred_check_branch
    %14 = sbr.rel (0) target = $region13
  $region12: #{_lambda_.1} parent=0 // pred_region
    _
  $region13: #{_lambda_.1} parent=0 // pred_fallthru
    _
  // Predicated region
  $region14: #{_lambda_.1} parent=0 // pred_check
    _
  $region15: #{_lambda_.1} parent=0 // pred_check_branch
    %16 = sbr.rel (0) target = $region17
  $region16: #{_lambda_.1} parent=0 // pred_region
    _
  $region17: #{_lambda_.1} parent=0 // pred_fallthru
    _
  %v17 = vld [vmem:[%s3] sm:$0xff]
  %v18 = vld [vmem:[%s3 + $0x8] sm:$0x1]
  %v19 = vld [vmem:[%s3 + $0x9] sm:$0x3]
  %v20 = vld [vmem:[%s2] sm:$0xff]
  %v21 = vld [vmem:[%s0] sm:$0xff]
  %v22 = vld [vmem:[%s0 + $0x8] sm:$0xff]
  %v23 = vld [vmem:[%s0 + $0x10] sm:$0xff]
  %v24 = vld [vmem:[%s0 + $0x18] sm:$0xff]
  %v25 = vld [vmem:[%s0 + $0x20] sm:$0xff]
  %v26 = vld [vmem:[%s0 + $0x28] sm:$0xff]
  %v27 = vld [vmem:[%s0 + $0x30] sm:$0x1]
  %vm28 = vcmask 400384
  %v30 = vsel %vm28, %v20, 0
  %vm32 = vcmask 1040384
  %v34 = vsel %vm32, %v27, 0
  %36 = vmatprep.subr.mxu0 0.0
  %37 = vmatpush1.msra.mxu0 %v21
  %38 = vmatprep.subr.mxu0 0.0
  %39 = vmatpush1.msra.mxu0 %v22
  %40 = vmatprep.subr.mxu0 0.0
  %41 = vmatpush1.msra.mxu0 %v23
  %42 = vmatprep.subr.mxu0 0.0
  %43 = vmatpush1.msra.mxu0 %v24
  %44 = vmatprep.subr.mxu0 0.0
  %45 = vmatpush1.msra.mxu0 %v25
  %46 = vmatprep.subr.mxu0 0.0
  %47 = vmatpush1.msra.mxu0 %v26
  %48 = vmatprep.subr.mxu0 0.0
  %49 = vmatpush1.msra.mxu0 %v34
  %50 = vmatprep.subr.mxu0 0.0
  %51 = vmatpush1.msra.mxu0 0.0
  %52 = vmatprep.subr.mxu0 0.0
  %53 = vmatpush1.msra.mxu0 0.0
  %54 = vmatprep.subr.mxu0 0.0
  %55 = vmatpush1.msra.mxu0 0.0
  %56 = vmatprep.subr.mxu0 0.0
  %57 = vmatpush1.msra.mxu0 0.0
  %58 = vmatprep.subr.mxu0 0.0
  %59 = vmatpush1.msra.mxu0 0.0
  %60 = vmatprep.subr.mxu0 0.0
  %61 = vmatpush1.msra.mxu0 0.0
  %62 = vmatprep.subr.mxu0 0.0
  %63 = vmatpush1.msra.mxu0 0.0
  %64 = vmatprep.subr.mxu0 0.0
  %65 = vmatpush1.msra.mxu0 0.0
  %66 = vmatprep.subr.mxu0 0.0
  %67 = vmatpush1.msra.mxu0 0.0
  %68 = vmatprep.subr.mxu0 0.0
  %69 = vmatpush1.msra.mxu0 0.0
  %70 = vmatprep.subr.mxu0 0.0
  %71 = vmatpush1.msra.mxu0 0.0
  %72 = vmatprep.subr.mxu0 0.0
  %73 = vmatpush1.msra.mxu0 0.0
  %74 = vmatprep.subr.mxu0 0.0
  %75 = vmatpush1.msra.mxu0 0.0
  %76 = vmatprep.subr.mxu0 0.0
  %77 = vmatpush1.msra.mxu0 0.0
  %78 = vmatprep.subr.mxu0 0.0
  %79 = vmatpush1.msra.mxu0 0.0
  %80 = vmatprep.subr.mxu0 0.0
  %81 = vmatpush1.msra.mxu0 0.0
  %82 = vmatprep.subr.mxu0 0.0
  %83 = vmatpush1.msra.mxu0 0.0
  %84 = vmatprep.subr.mxu0 0.0
  %85 = vmatpush1.msra.mxu0 0.0
  %86 = vmatprep.subr.mxu0 0.0
  %87 = vmatpush1.msra.mxu0 0.0
  %88 = vmatprep.subr.mxu0 0.0
  %89 = vmatpush1.msra.mxu0 0.0
  %90 = vmatprep.subr.mxu0 0.0
  %91 = vmatpush1.msra.mxu0 0.0
  %92 = vmatprep.subr.mxu0 0.0
  %93 = vmatpush1.msra.mxu0 0.0
  %94 = vmatprep.subr.mxu0 0.0
  %95 = vmatpush1.msra.mxu0 0.0
  %96 = vmatprep.subr.mxu0 0.0
  %97 = vmatpush1.msra.mxu0 0.0
  %98 = vmatprep.subr.mxu0 0.0
  %99 = vmatpush1.msra.mxu0 0.0
  %100 = vmatprep.mubr.f32.mxu0 0.0
  %101 = vmatmul.mubr.f32.gmra.mrb[0].mxu0 %v30
  %v102 = vpop.f32.mrb[0].mxu0
  %v103 = vadd.f32 0.0, %v102
  %v104 = vpop.f32.mrb[0].mxu0
  %105 = vdwg.mxu0
  %v106 = vmax.f32 %v103, 0.0
  %v107 = vld [vmem:[%s1] sm:$0xff]
  %108 = vrot.lane.b32.xlu0 %v106, 8
  %v109 = vpop.permute.xlu0 %108
  %v110 = vlaneseq
  %v111 = vshrl.u32 %v110, 7
  %v112 = vsub.s32 0, %v111
  %v113 = vrot.slane %v17, %v112
  %v114 = vmul.f32 %v109, %v113
  %115 = vrot.lane.b32.xlu0 %v106, 7
  %v116 = vpop.permute.xlu0 %115
  %v117 = vlaneseq
  %v118 = vshrl.u32 %v117, 7
  %v119 = vsub.s32 1, %v118
  %v120 = vrot.slane %v17, %v119
  %v121 = vmul.f32 %v116, %v120
  %122 = vrot.lane.b32.xlu0 %v106, 6
  %v123 = vpop.permute.xlu0 %122
  %v124 = vlaneseq
  %v125 = vshrl.u32 %v124, 7
  %v126 = vsub.s32 2, %v125
  %v127 = vrot.slane %v17, %v126
  %v128 = vmul.f32 %v123, %v127
  %129 = vrot.lane.b32.xlu0 %v106, 1
  %v130 = vpop.permute.xlu0 %129
  %v131 = vlaneseq
  %v132 = vshrl.u32 %v131, 7
  %v133 = vsub.s32 3, %v132
  %v134 = vrot.slane %v17, %v133
  %v135 = vmul.f32 %v130, %v134
  %v136 = vlaneseq
  %v137 = vshrl.u32 %v136, 7
  %v138 = vsub.s32 4, %v137
  %v139 = vrot.slane %v17, %v138
  %v140 = vmul.f32 %v106, %v139
  %141 = vrot.lane.b32.xlu0 %v106, 127
  %v142 = vpop.permute.xlu0 %141
  %v143 = vlaneseq
  %v144 = vshrl.u32 %v143, 7
  %v145 = vsub.s32 5, %v144
  %v146 = vrot.slane %v17, %v145
  %v147 = vmul.f32 %v142, %v146
  %148 = vrot.lane.b32.xlu0 %v106, 122
  %v149 = vpop.permute.xlu0 %148
  %v150 = vlaneseq
  %v151 = vshrl.u32 %v150, 7
  %v152 = vsub.s32 6, %v151
  %v153 = vrot.slane %v17, %v152
  %v154 = vmul.f32 %v149, %v153
  %155 = vrot.lane.b32.xlu0 %v106, 121
  %v156 = vpop.permute.xlu0 %155
  %v157 = vlaneseq
  %v158 = vshrl.u32 %v157, 7
  %v159 = vsub.s32 7, %v158
  %v160 = vrot.slane %v17, %v159
  %v161 = vmul.f32 %v156, %v160
  %162 = vrot.lane.b32.xlu0 %v106, 120
  %v163 = vpop.permute.xlu0 %162
  %v164 = vlaneseq
  %v165 = vshrl.u32 %v164, 7
  %v166 = vsub.s32 0, %v165
  %v167 = vrot.slane %v18, %v166
  %v168 = vmul.f32 %v163, %v167
  %vm169 = vcmask 588800
  %v171 = vsel %vm169, %v107, 0
  %173 = vmatprep.subr.mxu0 0.0
  %174 = vmatpush1.msra.mxu0 %v114
  %175 = vmatprep.subr.mxu0 0.0
  %176 = vmatpush1.msra.mxu0 %v121
  %177 = vmatprep.subr.mxu0 0.0
  %178 = vmatpush1.msra.mxu0 %v128
  %179 = vmatprep.subr.mxu0 0.0
  %180 = vmatpush1.msra.mxu0 %v135
  %181 = vmatprep.subr.mxu0 0.0
  %182 = vmatpush1.msra.mxu0 %v140
  %183 = vmatprep.subr.mxu0 0.0
  %184 = vmatpush1.msra.mxu0 %v147
  %185 = vmatprep.subr.mxu0 0.0
  %186 = vmatpush1.msra.mxu0 %v154
  %187 = vmatprep.subr.mxu0 0.0
  %188 = vmatpush1.msra.mxu0 %v161
  %189 = vmatprep.subr.mxu0 0.0
  %190 = vmatpush1.msra.mxu0 %v168
  %191 = vmatprep.subr.mxu0 0.0
  %192 = vmatpush1.msra.mxu0 0.0
  %193 = vmatprep.subr.mxu0 0.0
  %194 = vmatpush1.msra.mxu0 0.0
  %195 = vmatprep.subr.mxu0 0.0
  %196 = vmatpush1.msra.mxu0 0.0
  %197 = vmatprep.subr.mxu0 0.0
  %198 = vmatpush1.msra.mxu0 0.0
  %199 = vmatprep.subr.mxu0 0.0
  %200 = vmatpush1.msra.mxu0 0.0
  %201 = vmatprep.subr.mxu0 0.0
  %202 = vmatpush1.msra.mxu0 0.0
  %203 = vmatprep.subr.mxu0 0.0
  %204 = vmatpush1.msra.mxu0 0.0
  %205 = vmatprep.subr.mxu0 0.0
  %206 = vmatpush1.msra.mxu0 0.0
  %207 = vmatprep.subr.mxu0 0.0
  %208 = vmatpush1.msra.mxu0 0.0
  %209 = vmatprep.subr.mxu0 0.0
  %210 = vmatpush1.msra.mxu0 0.0
  %211 = vmatprep.subr.mxu0 0.0
  %212 = vmatpush1.msra.mxu0 0.0
  %213 = vmatprep.subr.mxu0 0.0
  %214 = vmatpush1.msra.mxu0 0.0
  %215 = vmatprep.subr.mxu0 0.0
  %216 = vmatpush1.msra.mxu0 0.0
  %217 = vmatprep.subr.mxu0 0.0
  %218 = vmatpush1.msra.mxu0 0.0
  %219 = vmatprep.subr.mxu0 0.0
  %220 = vmatpush1.msra.mxu0 0.0
  %221 = vmatprep.subr.mxu0 0.0
  %222 = vmatpush1.msra.mxu0 0.0
  %223 = vmatprep.subr.mxu0 0.0
  %224 = vmatpush1.msra.mxu0 0.0
  %225 = vmatprep.subr.mxu0 0.0
  %226 = vmatpush1.msra.mxu0 0.0
  %227 = vmatprep.subr.mxu0 0.0
  %228 = vmatpush1.msra.mxu0 0.0
  %229 = vmatprep.subr.mxu0 0.0
  %230 = vmatpush1.msra.mxu0 0.0
  %231 = vmatprep.subr.mxu0 0.0
  %232 = vmatpush1.msra.mxu0 0.0
  %233 = vmatprep.subr.mxu0 0.0
  %234 = vmatpush1.msra.mxu0 0.0
  %235 = vmatprep.subr.mxu0 0.0
  %236 = vmatpush1.msra.mxu0 0.0
  %237 = vmatprep.mubr.f32.mxu0 0.0
  %238 = vmatmul.mubr.f32.gmra.mrb[0].mxu0 %v171
  %v239 = vpop.f32.mrb[0].mxu0
  %v240 = vadd.f32 0.0, %v239
  %v241 = vpop.f32.mrb[0].mxu0
  %242 = vdwg.mxu0
  %v243 = vmul.f32 %v240, %v240
  %244 = vadd.xlane.f32.xlu0 %v240
  %v245 = vpop.xlane.xlu0 %244
  %246 = vadd.xlane.f32.xlu0 %v243
  %v247 = vpop.xlane.xlu0 %246
  %v248 = vmul.f32 %v245, 0.010204081
  %v249 = vmul.f32 %v247, 0.010204081
  %v250 = vmul.f32 %v248, %v248
  %v251 = vsub.f32 %v249, %v250
  %v252 = vmax.f32 %v251, 0.0
  %v253 = vadd.f32 %v252, 1e-05
  %v254 = vrsqrt.pop %v253
  %v255 = vmul.f32 %v107, %v254
  %v256 = vmul.f32 %v255, %v248
  %258 = vrot.lane.b32.xlu0 %v256, 1
  %v259 = vpop.permute.xlu0 %258
  %v261 = vsub.f32 %v107, %v259
  %263 = vset.pattern.permute.xlu0 72
  %264 = vperm.xlu0 %263, %v255
  %v265 = vpop.permute.xlu0 %264
  %v267 = vmul.f32 %v240, %v265
  %269 = vset.pattern.permute.xlu0 73
  %270 = vperm.xlu0 %269, %v261
  %v271 = vpop.permute.xlu0 %270
  %v273 = vadd.f32 %v267, %v271
  %v274 = vmax.f32 %v273, 0.0
  %s275 = scalar_lea.vmem %s1, 8
  %v276 = vld [vmem:[%s275] sm:$0xff]
  %277 = vrot.lane.b32.xlu0 %v274, 8
  %v278 = vpop.permute.xlu0 %277
  %v279 = vmul.f32 %v278, %v113
  %280 = vrot.lane.b32.xlu0 %v274, 7
  %v281 = vpop.permute.xlu0 %280
  %v282 = vmul.f32 %v281, %v120
  %283 = vrot.lane.b32.xlu0 %v274, 6
  %v284 = vpop.permute.xlu0 %283
  %v285 = vmul.f32 %v284, %v127
  %286 = vrot.lane.b32.xlu0 %v274, 1
  %v287 = vpop.permute.xlu0 %286
  %v288 = vmul.f32 %v287, %v134
  %v289 = vmul.f32 %v274, %v139
  %290 = vrot.lane.b32.xlu0 %v274, 127
  %v291 = vpop.permute.xlu0 %290
  %v292 = vmul.f32 %v291, %v146
  %293 = vrot.lane.b32.xlu0 %v274, 122
  %v294 = vpop.permute.xlu0 %293
  %v295 = vmul.f32 %v294, %v153
  %296 = vrot.lane.b32.xlu0 %v274, 121
  %v297 = vpop.permute.xlu0 %296
  %v298 = vmul.f32 %v297, %v160
  %299 = vrot.lane.b32.xlu0 %v274, 120
  %v300 = vpop.permute.xlu0 %299
  %v301 = vmul.f32 %v300, %v167
  %v303 = vsel %vm169, %v276, 0
  %305 = vmatprep.subr.mxu0 0.0
  %306 = vmatpush1.msra.mxu0 %v279
  %307 = vmatprep.subr.mxu0 0.0
  %308 = vmatpush1.msra.mxu0 %v282
  %309 = vmatprep.subr.mxu0 0.0
  %310 = vmatpush1.msra.mxu0 %v285
  %311 = vmatprep.subr.mxu0 0.0
  %312 = vmatpush1.msra.mxu0 %v288
  %313 = vmatprep.subr.mxu0 0.0
  %314 = vmatpush1.msra.mxu0 %v289
  %315 = vmatprep.subr.mxu0 0.0
  %316 = vmatpush1.msra.mxu0 %v292
  %317 = vmatprep.subr.mxu0 0.0
  %318 = vmatpush1.msra.mxu0 %v295
  %319 = vmatprep.subr.mxu0 0.0
  %320 = vmatpush1.msra.mxu0 %v298
  %321 = vmatprep.subr.mxu0 0.0
  %322 = vmatpush1.msra.mxu0 %v301
  %323 = vmatprep.subr.mxu0 0.0
  %324 = vmatpush1.msra.mxu0 0.0
  %325 = vmatprep.subr.mxu0 0.0
  %326 = vmatpush1.msra.mxu0 0.0
  %327 = vmatprep.subr.mxu0 0.0
  %328 = vmatpush1.msra.mxu0 0.0
  %329 = vmatprep.subr.mxu0 0.0
  %330 = vmatpush1.msra.mxu0 0.0
  %331 = vmatprep.subr.mxu0 0.0
  %332 = vmatpush1.msra.mxu0 0.0
  %333 = vmatprep.subr.mxu0 0.0
  %334 = vmatpush1.msra.mxu0 0.0
  %335 = vmatprep.subr.mxu0 0.0
  %336 = vmatpush1.msra.mxu0 0.0
  %337 = vmatprep.subr.mxu0 0.0
  %338 = vmatpush1.msra.mxu0 0.0
  %339 = vmatprep.subr.mxu0 0.0
  %340 = vmatpush1.msra.mxu0 0.0
  %341 = vmatprep.subr.mxu0 0.0
  %342 = vmatpush1.msra.mxu0 0.0
  %343 = vmatprep.subr.mxu0 0.0
  %344 = vmatpush1.msra.mxu0 0.0
  %345 = vmatprep.subr.mxu0 0.0
  %346 = vmatpush1.msra.mxu0 0.0
  %347 = vmatprep.subr.mxu0 0.0
  %348 = vmatpush1.msra.mxu0 0.0
  %349 = vmatprep.subr.mxu0 0.0
  %350 = vmatpush1.msra.mxu0 0.0
  %351 = vmatprep.subr.mxu0 0.0
  %352 = vmatpush1.msra.mxu0 0.0
  %353 = vmatprep.subr.mxu0 0.0
  %354 = vmatpush1.msra.mxu0 0.0
  %355 = vmatprep.subr.mxu0 0.0
  %356 = vmatpush1.msra.mxu0 0.0
  %357 = vmatprep.subr.mxu0 0.0
  %358 = vmatpush1.msra.mxu0 0.0
  %359 = vmatprep.subr.mxu0 0.0
  %360 = vmatpush1.msra.mxu0 0.0
  %361 = vmatprep.subr.mxu0 0.0
  %362 = vmatpush1.msra.mxu0 0.0
  %363 = vmatprep.subr.mxu0 0.0
  %364 = vmatpush1.msra.mxu0 0.0
  %365 = vmatprep.subr.mxu0 0.0
  %366 = vmatpush1.msra.mxu0 0.0
  %367 = vmatprep.subr.mxu0 0.0
  %368 = vmatpush1.msra.mxu0 0.0
  %369 = vmatprep.mubr.f32.mxu0 0.0
  %370 = vmatmul.mubr.f32.gmra.mrb[0].mxu0 %v303
  %v371 = vpop.f32.mrb[0].mxu0
  %v372 = vadd.f32 0.0, %v371
  %v373 = vpop.f32.mrb[0].mxu0
  %374 = vdwg.mxu0
  %v375 = vmul.f32 %v372, %v372
  %376 = vadd.xlane.f32.xlu0 %v372
  %v377 = vpop.xlane.xlu0 %376
  %378 = vadd.xlane.f32.xlu0 %v375
  %v379 = vpop.xlane.xlu0 %378
  %v380 = vmul.f32 %v377, 0.010204081
  %v381 = vmul.f32 %v379, 0.010204081
  %v382 = vmul.f32 %v380, %v380
  %v383 = vsub.f32 %v381, %v382
  %v384 = vmax.f32 %v383, 0.0
  %v385 = vadd.f32 %v384, 1e-05
  %v386 = vrsqrt.pop %v385
  %v387 = vmul.f32 %v276, %v386
  %v388 = vmul.f32 %v387, %v380
  %390 = vrot.lane.b32.xlu0 %v388, 1
  %v391 = vpop.permute.xlu0 %390
  %v393 = vsub.f32 %v276, %v391
  %395 = vset.pattern.permute.xlu0 72
  %396 = vperm.xlu0 %395, %v387
  %v397 = vpop.permute.xlu0 %396
  %v399 = vmul.f32 %v372, %v397
  %401 = vset.pattern.permute.xlu0 73
  %402 = vperm.xlu0 %401, %v393
  %v403 = vpop.permute.xlu0 %402
  %v405 = vadd.f32 %v399, %v403
  %v406 = vadd.f32 %v405, %v106
  %v407 = vmax.f32 %v406, 0.0
  %s408 = scalar_lea.vmem %s1, 16
  %v409 = vld [vmem:[%s408] sm:$0xff]
  %410 = vrot.lane.b32.xlu0 %v407, 8
  %v411 = vpop.permute.xlu0 %410
  %v412 = vmul.f32 %v411, %v113
  %413 = vrot.lane.b32.xlu0 %v407, 7
  %v414 = vpop.permute.xlu0 %413
  %v415 = vmul.f32 %v414, %v120
  %416 = vrot.lane.b32.xlu0 %v407, 6
  %v417 = vpop.permute.xlu0 %416
  %v418 = vmul.f32 %v417, %v127
  %419 = vrot.lane.b32.xlu0 %v407, 1
  %v420 = vpop.permute.xlu0 %419
  %v421 = vmul.f32 %v420, %v134
  %v422 = vmul.f32 %v407, %v139
  %423 = vrot.lane.b32.xlu0 %v407, 127
  %v424 = vpop.permute.xlu0 %423
  %v425 = vmul.f32 %v424, %v146
  %426 = vrot.lane.b32.xlu0 %v407, 122
  %v427 = vpop.permute.xlu0 %426
  %v428 = vmul.f32 %v427, %v153
  %429 = vrot.lane.b32.xlu0 %v407, 121
  %v430 = vpop.permute.xlu0 %429
  %v431 = vmul.f32 %v430, %v160
  %432 = vrot.lane.b32.xlu0 %v407, 120
  %v433 = vpop.permute.xlu0 %432
  %v434 = vmul.f32 %v433, %v167
  %v436 = vsel %vm169, %v409, 0
  %438 = vmatprep.subr.mxu0 0.0
  %439 = vmatpush1.msra.mxu0 %v412
  %440 = vmatprep.subr.mxu0 0.0
  %441 = vmatpush1.msra.mxu0 %v415
  %442 = vmatprep.subr.mxu0 0.0
  %443 = vmatpush1.msra.mxu0 %v418
  %444 = vmatprep.subr.mxu0 0.0
  %445 = vmatpush1.msra.mxu0 %v421
  %446 = vmatprep.subr.mxu0 0.0
  %447 = vmatpush1.msra.mxu0 %v422
  %448 = vmatprep.subr.mxu0 0.0
  %449 = vmatpush1.msra.mxu0 %v425
  %450 = vmatprep.subr.mxu0 0.0
  %451 = vmatpush1.msra.mxu0 %v428
  %452 = vmatprep.subr.mxu0 0.0
  %453 = vmatpush1.msra.mxu0 %v431
  %454 = vmatprep.subr.mxu0 0.0
  %455 = vmatpush1.msra.mxu0 %v434
  %456 = vmatprep.subr.mxu0 0.0
  %457 = vmatpush1.msra.mxu0 0.0
  %458 = vmatprep.subr.mxu0 0.0
  %459 = vmatpush1.msra.mxu0 0.0
  %460 = vmatprep.subr.mxu0 0.0
  %461 = vmatpush1.msra.mxu0 0.0
  %462 = vmatprep.subr.mxu0 0.0
  %463 = vmatpush1.msra.mxu0 0.0
  %464 = vmatprep.subr.mxu0 0.0
  %465 = vmatpush1.msra.mxu0 0.0
  %466 = vmatprep.subr.mxu0 0.0
  %467 = vmatpush1.msra.mxu0 0.0
  %468 = vmatprep.subr.mxu0 0.0
  %469 = vmatpush1.msra.mxu0 0.0
  %470 = vmatprep.subr.mxu0 0.0
  %471 = vmatpush1.msra.mxu0 0.0
  %472 = vmatprep.subr.mxu0 0.0
  %473 = vmatpush1.msra.mxu0 0.0
  %474 = vmatprep.subr.mxu0 0.0
  %475 = vmatpush1.msra.mxu0 0.0
  %476 = vmatprep.subr.mxu0 0.0
  %477 = vmatpush1.msra.mxu0 0.0
  %478 = vmatprep.subr.mxu0 0.0
  %479 = vmatpush1.msra.mxu0 0.0
  %480 = vmatprep.subr.mxu0 0.0
  %481 = vmatpush1.msra.mxu0 0.0
  %482 = vmatprep.subr.mxu0 0.0
  %483 = vmatpush1.msra.mxu0 0.0
  %484 = vmatprep.subr.mxu0 0.0
  %485 = vmatpush1.msra.mxu0 0.0
  %486 = vmatprep.subr.mxu0 0.0
  %487 = vmatpush1.msra.mxu0 0.0
  %488 = vmatprep.subr.mxu0 0.0
  %489 = vmatpush1.msra.mxu0 0.0
  %490 = vmatprep.subr.mxu0 0.0
  %491 = vmatpush1.msra.mxu0 0.0
  %492 = vmatprep.subr.mxu0 0.0
  %493 = vmatpush1.msra.mxu0 0.0
  %494 = vmatprep.subr.mxu0 0.0
  %495 = vmatpush1.msra.mxu0 0.0
  %496 = vmatprep.subr.mxu0 0.0
  %497 = vmatpush1.msra.mxu0 0.0
  %498 = vmatprep.subr.mxu0 0.0
  %499 = vmatpush1.msra.mxu0 0.0
  %500 = vmatprep.subr.mxu0 0.0
  %501 = vmatpush1.msra.mxu0 0.0
  %502 = vmatprep.mubr.f32.mxu0 0.0
  %503 = vmatmul.mubr.f32.gmra.mrb[0].mxu0 %v436
  %v504 = vpop.f32.mrb[0].mxu0
  %v505 = vadd.f32 0.0, %v504
  %v506 = vpop.f32.mrb[0].mxu0
  %507 = vdwg.mxu0
  %v508 = vmul.f32 %v505, %v505
  %509 = vadd.xlane.f32.xlu0 %v505
  %v510 = vpop.xlane.xlu0 %509
  %511 = vadd.xlane.f32.xlu0 %v508
  %v512 = vpop.xlane.xlu0 %511
  %v513 = vmul.f32 %v510, 0.010204081
  %v514 = vmul.f32 %v512, 0.010204081
  %v515 = vmul.f32 %v513, %v513
  %v516 = vsub.f32 %v514, %v515
  %v517 = vmax.f32 %v516, 0.0
  %v518 = vadd.f32 %v517, 1e-05
  %v519 = vrsqrt.pop %v518
  %v520 = vmul.f32 %v409, %v519
  %v521 = vmul.f32 %v520, %v513
  %523 = vrot.lane.b32.xlu0 %v521, 1
  %v524 = vpop.permute.xlu0 %523
  %v526 = vsub.f32 %v409, %v524
  %528 = vset.pattern.permute.xlu0 72
  %529 = vperm.xlu0 %528, %v520
  %v530 = vpop.permute.xlu0 %529
  %v532 = vmul.f32 %v505, %v530
  %534 = vset.pattern.permute.xlu0 73
  %535 = vperm.xlu0 %534, %v526
  %v536 = vpop.permute.xlu0 %535
  %v538 = vadd.f32 %v532, %v536
  %v539 = vmax.f32 %v538, 0.0
  %s540 = scalar_lea.vmem %s1, 24
  %v541 = vld [vmem:[%s540] sm:$0xff]
  %542 = vrot.lane.b32.xlu0 %v539, 8
  %v543 = vpop.permute.xlu0 %542
  %v544 = vmul.f32 %v543, %v113
  %545 = vrot.lane.b32.xlu0 %v539, 7
  %v546 = vpop.permute.xlu0 %545
  %v547 = vmul.f32 %v546, %v120
  %548 = vrot.lane.b32.xlu0 %v539, 6
  %v549 = vpop.permute.xlu0 %548
  %v550 = vmul.f32 %v549, %v127
  %551 = vrot.lane.b32.xlu0 %v539, 1
  %v552 = vpop.permute.xlu0 %551
  %v553 = vmul.f32 %v552, %v134
  %v554 = vmul.f32 %v539, %v139
  %555 = vrot.lane.b32.xlu0 %v539, 127
  %v556 = vpop.permute.xlu0 %555
  %v557 = vmul.f32 %v556, %v146
  %558 = vrot.lane.b32.xlu0 %v539, 122
  %v559 = vpop.permute.xlu0 %558
  %v560 = vmul.f32 %v559, %v153
  %561 = vrot.lane.b32.xlu0 %v539, 121
  %v562 = vpop.permute.xlu0 %561
  %v563 = vmul.f32 %v562, %v160
  %564 = vrot.lane.b32.xlu0 %v539, 120
  %v565 = vpop.permute.xlu0 %564
  %v566 = vmul.f32 %v565, %v167
  %v568 = vsel %vm169, %v541, 0
  %570 = vmatprep.subr.mxu0 0.0
  %571 = vmatpush1.msra.mxu0 %v544
  %572 = vmatprep.subr.mxu0 0.0
  %573 = vmatpush1.msra.mxu0 %v547
  %574 = vmatprep.subr.mxu0 0.0
  %575 = vmatpush1.msra.mxu0 %v550
  %576 = vmatprep.subr.mxu0 0.0
  %577 = vmatpush1.msra.mxu0 %v553
  %578 = vmatprep.subr.mxu0 0.0
  %579 = vmatpush1.msra.mxu0 %v554
  %580 = vmatprep.subr.mxu0 0.0
  %581 = vmatpush1.msra.mxu0 %v557
  %582 = vmatprep.subr.mxu0 0.0
  %583 = vmatpush1.msra.mxu0 %v560
  %584 = vmatprep.subr.mxu0 0.0
  %585 = vmatpush1.msra.mxu0 %v563
  %586 = vmatprep.subr.mxu0 0.0
  %587 = vmatpush1.msra.mxu0 %v566
  %588 = vmatprep.subr.mxu0 0.0
  %589 = vmatpush1.msra.mxu0 0.0
  %590 = vmatprep.subr.mxu0 0.0
  %591 = vmatpush1.msra.mxu0 0.0
  %592 = vmatprep.subr.mxu0 0.0
  %593 = vmatpush1.msra.mxu0 0.0
  %594 = vmatprep.subr.mxu0 0.0
  %595 = vmatpush1.msra.mxu0 0.0
  %596 = vmatprep.subr.mxu0 0.0
  %597 = vmatpush1.msra.mxu0 0.0
  %598 = vmatprep.subr.mxu0 0.0
  %599 = vmatpush1.msra.mxu0 0.0
  %600 = vmatprep.subr.mxu0 0.0
  %601 = vmatpush1.msra.mxu0 0.0
  %602 = vmatprep.subr.mxu0 0.0
  %603 = vmatpush1.msra.mxu0 0.0
  %604 = vmatprep.subr.mxu0 0.0
  %605 = vmatpush1.msra.mxu0 0.0
  %606 = vmatprep.subr.mxu0 0.0
  %607 = vmatpush1.msra.mxu0 0.0
  %608 = vmatprep.subr.mxu0 0.0
  %609 = vmatpush1.msra.mxu0 0.0
  %610 = vmatprep.subr.mxu0 0.0
  %611 = vmatpush1.msra.mxu0 0.0
  %612 = vmatprep.subr.mxu0 0.0
  %613 = vmatpush1.msra.mxu0 0.0
  %614 = vmatprep.subr.mxu0 0.0
  %615 = vmatpush1.msra.mxu0 0.0
  %616 = vmatprep.subr.mxu0 0.0
  %617 = vmatpush1.msra.mxu0 0.0
  %618 = vmatprep.subr.mxu0 0.0
  %619 = vmatpush1.msra.mxu0 0.0
  %620 = vmatprep.subr.mxu0 0.0
  %621 = vmatpush1.msra.mxu0 0.0
  %622 = vmatprep.subr.mxu0 0.0
  %623 = vmatpush1.msra.mxu0 0.0
  %624 = vmatprep.subr.mxu0 0.0
  %625 = vmatpush1.msra.mxu0 0.0
  %626 = vmatprep.subr.mxu0 0.0
  %627 = vmatpush1.msra.mxu0 0.0
  %628 = vmatprep.subr.mxu0 0.0
  %629 = vmatpush1.msra.mxu0 0.0
  %630 = vmatprep.subr.mxu0 0.0
  %631 = vmatpush1.msra.mxu0 0.0
  %632 = vmatprep.subr.mxu0 0.0
  %633 = vmatpush1.msra.mxu0 0.0
  %634 = vmatprep.mubr.f32.mxu0 0.0
  %635 = vmatmul.mubr.f32.gmra.mrb[0].mxu0 %v568
  %v636 = vpop.f32.mrb[0].mxu0
  %v637 = vadd.f32 0.0, %v636
  %v638 = vpop.f32.mrb[0].mxu0
  %639 = vdwg.mxu0
  %v640 = vmul.f32 %v637, %v637
  %641 = vadd.xlane.f32.xlu0 %v637
  %v642 = vpop.xlane.xlu0 %641
  %643 = vadd.xlane.f32.xlu0 %v640
  %v644 = vpop.xlane.xlu0 %643
  %v645 = vmul.f32 %v642, 0.010204081
  %v646 = vmul.f32 %v644, 0.010204081
  %v647 = vmul.f32 %v645, %v645
  %v648 = vsub.f32 %v646, %v647
  %v649 = vmax.f32 %v648, 0.0
  %v650 = vadd.f32 %v649, 1e-05
  %v651 = vrsqrt.pop %v650
  %v652 = vmul.f32 %v541, %v651
  %v653 = vmul.f32 %v652, %v645
  %655 = vrot.lane.b32.xlu0 %v653, 1
  %v656 = vpop.permute.xlu0 %655
  %v658 = vsub.f32 %v541, %v656
  %660 = vset.pattern.permute.xlu0 72
  %661 = vperm.xlu0 %660, %v652
  %v662 = vpop.permute.xlu0 %661
  %v664 = vmul.f32 %v637, %v662
  %666 = vset.pattern.permute.xlu0 73
  %667 = vperm.xlu0 %666, %v658
  %v668 = vpop.permute.xlu0 %667
  %v670 = vadd.f32 %v664, %v668
  %v671 = vadd.f32 %v670, %v407
  %v672 = vmax.f32 %v671, 0.0
  %v673 = vld [vmem:[%s2 + $0x8] sm:$0x3]
  %674 = vrot.lane.b32.xlu0 %v672, 8
  %v675 = vpop.permute.xlu0 %674
  %v676 = vmul.f32 %v675, %v113
  %677 = vrot.lane.b32.xlu0 %v672, 7
  %v678 = vpop.permute.xlu0 %677
  %v679 = vmul.f32 %v678, %v120
  %680 = vrot.lane.b32.xlu0 %v672, 6
  %v681 = vpop.permute.xlu0 %680
  %v682 = vmul.f32 %v681, %v127
  %683 = vrot.lane.b32.xlu0 %v672, 1
  %v684 = vpop.permute.xlu0 %683
  %v685 = vmul.f32 %v684, %v134
  %v686 = vmul.f32 %v672, %v139
  %687 = vrot.lane.b32.xlu0 %v672, 127
  %v688 = vpop.permute.xlu0 %687
  %v689 = vmul.f32 %v688, %v146
  %690 = vrot.lane.b32.xlu0 %v672, 122
  %v691 = vpop.permute.xlu0 %690
  %v692 = vmul.f32 %v691, %v153
  %693 = vrot.lane.b32.xlu0 %v672, 121
  %v694 = vpop.permute.xlu0 %693
  %v695 = vmul.f32 %v694, %v160
  %696 = vrot.lane.b32.xlu0 %v672, 120
  %v697 = vpop.permute.xlu0 %696
  %v698 = vmul.f32 %v697, %v167
  %700 = vset.pattern.permute.xlu0 72
  %701 = vperm.xlu0 %700, %v673
  %v702 = vpop.permute.xlu0 %701
  %v704 = vsel %vm169, %v673, 0
  %706 = vmatprep.subr.mxu0 0.0
  %707 = vmatpush1.msra.mxu0 %v676
  %708 = vmatprep.subr.mxu0 0.0
  %709 = vmatpush1.msra.mxu0 %v679
  %710 = vmatprep.subr.mxu0 0.0
  %711 = vmatpush1.msra.mxu0 %v682
  %712 = vmatprep.subr.mxu0 0.0
  %713 = vmatpush1.msra.mxu0 %v685
  %714 = vmatprep.subr.mxu0 0.0
  %715 = vmatpush1.msra.mxu0 %v686
  %716 = vmatprep.subr.mxu0 0.0
  %717 = vmatpush1.msra.mxu0 %v689
  %718 = vmatprep.subr.mxu0 0.0
  %719 = vmatpush1.msra.mxu0 %v692
  %720 = vmatprep.subr.mxu0 0.0
  %721 = vmatpush1.msra.mxu0 %v695
  %722 = vmatprep.subr.mxu0 0.0
  %723 = vmatpush1.msra.mxu0 %v698
  %724 = vmatprep.subr.mxu0 0.0
  %725 = vmatpush1.msra.mxu0 0.0
  %726 = vmatprep.subr.mxu0 0.0
  %727 = vmatpush1.msra.mxu0 0.0
  %728 = vmatprep.subr.mxu0 0.0
  %729 = vmatpush1.msra.mxu0 0.0
  %730 = vmatprep.subr.mxu0 0.0
  %731 = vmatpush1.msra.mxu0 0.0
  %732 = vmatprep.subr.mxu0 0.0
  %733 = vmatpush1.msra.mxu0 0.0
  %734 = vmatprep.subr.mxu0 0.0
  %735 = vmatpush1.msra.mxu0 0.0
  %736 = vmatprep.subr.mxu0 0.0
  %737 = vmatpush1.msra.mxu0 0.0
  %738 = vmatprep.subr.mxu0 0.0
  %739 = vmatpush1.msra.mxu0 0.0
  %740 = vmatprep.subr.mxu0 0.0
  %741 = vmatpush1.msra.mxu0 0.0
  %742 = vmatprep.subr.mxu0 0.0
  %743 = vmatpush1.msra.mxu0 0.0
  %744 = vmatprep.subr.mxu0 0.0
  %745 = vmatpush1.msra.mxu0 0.0
  %746 = vmatprep.subr.mxu0 0.0
  %747 = vmatpush1.msra.mxu0 0.0
  %748 = vmatprep.subr.mxu0 0.0
  %749 = vmatpush1.msra.mxu0 0.0
  %750 = vmatprep.subr.mxu0 0.0
  %751 = vmatpush1.msra.mxu0 0.0
  %752 = vmatprep.subr.mxu0 0.0
  %753 = vmatpush1.msra.mxu0 0.0
  %754 = vmatprep.subr.mxu0 0.0
  %755 = vmatpush1.msra.mxu0 0.0
  %756 = vmatprep.subr.mxu0 0.0
  %757 = vmatpush1.msra.mxu0 0.0
  %758 = vmatprep.subr.mxu0 0.0
  %759 = vmatpush1.msra.mxu0 0.0
  %760 = vmatprep.subr.mxu0 0.0
  %761 = vmatpush1.msra.mxu0 0.0
  %762 = vmatprep.subr.mxu0 0.0
  %763 = vmatpush1.msra.mxu0 0.0
  %764 = vmatprep.subr.mxu0 0.0
  %765 = vmatpush1.msra.mxu0 0.0
  %766 = vmatprep.subr.mxu0 0.0
  %767 = vmatpush1.msra.mxu0 0.0
  %768 = vmatprep.subr.mxu0 0.0
  %769 = vmatpush1.msra.mxu0 0.0
  %770 = vmatprep.mubr.f32.mxu0 0.0
  %771 = vmatmul.mubr.f32.gmra.mrb[0].mxu0 %v704
  %v772 = vpop.f32.mrb[0].mxu0
  %v773 = vadd.f32 %v702, %v772
  %v774 = vpop.f32.mrb[0].mxu0
  %775 = vdwg.mxu0
  %v776 = vld [vmem:[%s0 + $0x31] sm:$0x1]
  %v777 = vmul.f32 %v773, 0.5
  %v778 = vmul.f32 %v777, 1.442695
  %v779 = vpow.pop %v778
  %v781 = vrot.slane %v776, 7
  %v783 = vmul.f32 %v779, %v781
  %v785 = vrot.slane %v783, 1
  %v787 = vadd.f32 %v773, %v785
  %v788 = vmul.f32 %v776, %v776
  %v790 = vrot.slane %v788, 7
  %v792 = vadd.f32 %v773, %v790
  %v793 = vmul.f32 %v792, 0.5
  %v794 = vlaneseq
  %v795 = vshrl.u32 %v794, 7
  %v796 = vsub.s32 1, %v795
  %v797 = vrot.slane %v793, %v796
  %v798 = vmul.f32 %v19, %v797
  %vm799 = vcmask 1041408
  %v800 = vsel %vm799, %v798, 0.0
  %801 = vadd.xlane.f32.xlu0 %v800
  %v802 = vpop.xlane.xlu0 %801
  %v803 = vmul.f32 %v19, %v802
  %v804 = vsel %vm799, %v803, 0.0
  %v805 = vrot.slane %v804, 4
  %v806 = vadd.f32 %v804, %v805
  %v807 = vrot.slane %v806, 2
  %v808 = vadd.f32 %v806, %v807
  %v809 = vrot.slane %v808, 1
  %v810 = vadd.f32 %v808, %v809
  %v812 = vrot.slane %v773, 7
  %v814 = vsel %vm32, %v787, %v812
  %v815 = vsel %vm799, %v814, %v812
  %vm816 = vcmask 1042432
  %v817 = vsel %vm816, %v815, %v810
  %818 = vst [vmem:[%s4] sm:$0xf] %v817
  // Predicated region
  $region18: #{_lambda_.1} parent=0 // pred_check
    _
  $region19: #{_lambda_.1} parent=0 // pred_check_branch
    %820 = sbr.rel (0) target = $region21
  $region20: #{_lambda_.1} parent=0 // pred_region
    _
  $region21: #{_lambda_.1} parent=0 // pred_fallthru
    _
  // Predicated region
  $region22: #{_lambda_.1} parent=0 // pred_check
    _
  $region23: #{_lambda_.1} parent=0 // pred_check_branch
    %822 = sbr.rel (0) target = $region25
  $region24: #{_lambda_.1} parent=0 // pred_region
    _
  $region25: #{_lambda_.1} parent=0 // pred_fallthru
    _

</llo_original>
